<compile_context>
chip_gen: v7x
topology: tpu7x:2x2x1
jax: 0.10.0
libtpu: 0.0.40
codegen_flags: <defaults>
</compile_context>

<pallas_src>
import jax
import jax.numpy as jnp
from jax import lax
from jax.experimental import pallas as pl
from jax.experimental.pallas import tpu as pltpu

_VMEM_SPEC = pl.BlockSpec(memory_space=pltpu.MemorySpace.VMEM)
_EPS = 1e-5
_HID = 10          # ownLayer / l0_2 output width (from the module definition)
_N_ROUNDS = 4
_LANES = 128
_SUB = 8


def _round_up(v, m):
    return ((v + m - 1) // m) * m


# ------------------------------ packing helpers ----------------------------- #

def _pack_rows_f32(arrays):
    """Stack 2-D f32 arrays into one (R, 128) buffer; each segment 8-row aligned."""
    segs, offs, row = [], [], 0
    for a in arrays:
        a = jnp.asarray(a, jnp.float32)
        r, c = a.shape
        assert c <= _LANES, "packed segment wider than one lane tile"
        rp = _round_up(r, _SUB)
        segs.append(jnp.pad(a, ((0, rp - r), (0, _LANES - c))))
        offs.append(row)
        row += rp
    return jnp.concatenate(segs, axis=0), offs


def _pack_indices(src, dst, pick):
    """Pack src/dst/pickable into one int32 (R, 128) buffer.

    Layout (all offsets 8-row aligned, computed statically):
      row 0          : dst as a lane row  -> read as (1, E)
      rows 8..8+E    : src as a column    -> read as (E, 1)
      rows 8+Ep..    : pick as a column   -> read as (P, 1)
    """
    e_cnt = src.shape[0]
    n_pick = pick.shape[0]
    lanes = max(_LANES, _round_up(e_cnt, _LANES))
    e_pad = _round_up(e_cnt, _SUB)
    p_pad = _round_up(n_pick, _SUB)
    buf = jnp.zeros((_SUB + e_pad + p_pad, lanes), jnp.int32)
    buf = buf.at[0, :e_cnt].set(dst.astype(jnp.int32))
    buf = buf.at[_SUB:_SUB + e_cnt, 0].set(src.astype(jnp.int32))
    buf = buf.at[_SUB + e_pad:_SUB + e_pad + n_pick, 0].set(pick.astype(jnp.int32))
    return buf, _SUB, _SUB + e_pad


def _pack_own_layers(params, xf):
    """Split/stack the 4 ownLayer weight sets for the fused kernel."""
    names = ("l1", "l2", "l3", "l4")
    wn_x = jnp.concatenate([params[k][0][:xf, :] for k in names], axis=1)   # (xf, 40)
    wm_x = jnp.concatenate([params[k][1][:xf, :] for k in names], axis=1)   # (xf, 40)
    we_all = jnp.concatenate([params[k][2] for k in names], axis=1)         # (ef, 40)
    # per-round hidden weights, leading-axis stacked: (4, 10, 2*HID) = [Wn_h | Wm_h]
    whid = jnp.stack(
        [jnp.concatenate([params[k][0][xf:, :], params[k][1][xf:, :]], axis=1)
         for k in names], axis=0).astype(jnp.float32)                        # (4, 10, 20)
    bown = jnp.concatenate([params[k][3] for k in names], axis=1)            # (1, 40)
    return wn_x, wm_x, we_all, whid, bown


# ------------------------------ fused kernel ------------------------------- #

def _graphnorm(v, gamma, beta, alpha):
    mean = jnp.mean(v, axis=0, keepdims=True)
    vc = v - alpha * mean
    var = jnp.mean(vc * vc, axis=0, keepdims=True)
    return gamma * vc * lax.rsqrt(var + _EPS) + beta


def clique_forward(params, x, z, edge_index, z1edge_index, z2edge_index,
                   z3edge_index, edge_attr, pickable):
    del z, z1edge_index, z2edge_index, z3edge_index  # unused (as in reference)

    n, xf = x.shape
    e_cnt, ef = edge_attr.shape
    out_dim = params["l5"][0].shape[1]
    n_pick = pickable.shape[0]

    wn_x, wm_x, we_all, whid, bown = _pack_own_layers(params, xf)

    # ---- packed parameter buffer (single DMA instead of ~18) ----
    p_entries = {
        "w0": params["l0"][0], "b0": params["l0"][1],
        "g1": params["n"][0], "be1": params["n"][1], "a1": params["n"][2],
        "w02": params["l0_2"][0], "b02": params["l0_2"][1],
        "w0e": params["l0e"][0], "b0e": params["l0e"][1],
        "g2": params["n2"][0], "be2": params["n2"][1], "a2": params["n2"][2],
        "wnx": wn_x, "wmx": wm_x, "weall": we_all, "bown": bown,
        "w5": params["l5"][0], "b5": params["l5"][1],
    }
    p_names = list(p_entries)
    p_buf, p_rows = _pack_rows_f32([p_entries[k] for k in p_names])
    p_off = dict(zip(p_names, p_rows))
    p_shape = {k: tuple(p_entries[k].shape) for k in p_names}

    # ---- packed activation buffer (x + edge_attr, one DMA) ----
    a_buf, (x_off, e_off) = _pack_rows_f32([x, edge_attr])

    # ---- packed int32 graph-structure buffer (src/dst/pick, one DMA) ----
    idx_buf, src_off, pick_off = _pack_indices(edge_index[0], edge_index[1], pickable)

    def kernel(p_ref, a_ref, idx_ref, whid_ref, o_ref):
        f32 = jnp.float32

        def P(name):  # static, 8-row-aligned Ref-view slice of the packed params
            o = p_off[name]
            r, c = p_shape[name]
            return p_ref[o:o + r, :c]

        x_in = a_ref[x_off:x_off + n, :xf]
        e_in = a_ref[e_off:e_off + e_cnt, :ef]

        # ---- node stem: x1 = relu(l0_2(GraphNorm(l0(x))))  -> (N, 10) ----
        h = jnp.dot(x_in, P("w0"), preferred_element_type=f32) + P("b0")
        h = _graphnorm(h, P("g1"), P("be1"), P("a1"))
        x1 = jnp.maximum(
            jnp.dot(h, P("w02"), preferred_element_type=f32) + P("b02"), 0.0)

        # ---- edge stem: e = GraphNorm(l0e(edge_attr))  -> (E, ef) ----
        e = jnp.dot(e_in, P("w0e"), preferred_element_type=f32) + P("b0e")
        e = _graphnorm(e, P("g2"), P("be2"), P("a2"))

        # ---- graph structure built in-kernel (one-hot compares, no scatters) ----
        dst = idx_ref[0:1, :e_cnt]                             # (1, E)
        src = idx_ref[src_off:src_off + e_cnt, 0:1]            # (E, 1)
        pick = idx_ref[pick_off:pick_off + n_pick, 0:1]        # (P, 1)
        dst_oh = jnp.where(
            lax.broadcasted_iota(jnp.int32, (n, e_cnt), 0) == dst, 1.0, 0.0)
        src_oh = jnp.where(
            lax.broadcasted_iota(jnp.int32, (e_cnt, n), 1) == src, 1.0, 0.0)
        adj = jnp.dot(dst_oh, src_oh, preferred_element_type=f32)   # (N, N) counts

        # ---- ALL loop-invariant round terms folded into one (N, 4*HID) base ----
        xwn = jnp.dot(x_in, P("wnx"), preferred_element_type=f32)
        xwm = jnp.dot(x_in, P("wmx"), preferred_element_type=f32)
        emsg = jnp.dot(e, P("weall"), preferred_element_type=f32)
        eagg = jnp.dot(dst_oh, emsg, preferred_element_type=f32)
        base = (xwn + jnp.dot(adj, xwm, preferred_element_type=f32)
                + eagg + P("bown"))                                   # (N, 40)

        # ---- 4 rounds: x1 = relu(base_l + x1@Wn_h + adj@(x1@Wm_h)) ----
        for l in range(_N_ROUNDS):
            s0, s1 = _HID * l, _HID * (l + 1)
            hid = jnp.dot(x1, whid_ref[l], preferred_element_type=f32)  # (N, 2*HID)
            x1 = jnp.maximum(
                base[:, s0:s1] + hid[:, :_HID]
                + jnp.dot(adj, hid[:, _HID:], preferred_element_type=f32), 0.0)

        # ---- l5 + exact softmax on all rows (tile-dense); gather picked last ----
        logits = jnp.dot(x1, P("w5"), preferred_element_type=f32) + P("b5")
        m = jnp.max(logits, axis=1, keepdims=True)
        ez = jnp.exp(logits - m)
        probs = ez / jnp.sum(ez, axis=1, keepdims=True)
        pick_oh = jnp.where(
            lax.broadcasted_iota(jnp.int32, (n_pick, n), 1) == pick, 1.0, 0.0)
        o_ref[...] = jnp.dot(pick_oh, probs, preferred_element_type=f32)

    flops = 2 * (
        n * xf * xf + n * xf * _HID + e_cnt * ef * ef
        + n * e_cnt * n                                   # adjacency
        + 2 * n * xf * 4 * _HID + e_cnt * ef * 4 * _HID   # xwn/xwm/emsg
        + n * e_cnt * 4 * _HID + n * n * 4 * _HID         # eagg, adj@xwm
        + _N_ROUNDS * (n * _HID * 2 * _HID + n * n * _HID)
        + n * _HID * out_dim + n_pick * n * out_dim)
    bytes_accessed = 4 * (p_buf.size + a_buf.size + idx_buf.size
                          + whid.size + n_pick * out_dim)

    return pl.pallas_call(
        kernel,
        out_shape=jax.ShapeDtypeStruct((n_pick, out_dim), jnp.float32),
        in_specs=[_VMEM_SPEC] * 4,
        out_specs=_VMEM_SPEC,
        cost_estimate=pl.CostEstimate(
            flops=int(flops), transcendentals=int(n * out_dim),
            bytes_accessed=int(bytes_accessed)),
    )(p_buf, a_buf, idx_buf, whid)


# ----------------------------- parameter setup ------------------------------ #

def _init_linear(key, fan_in, fan_out):
    kw, kb = jax.random.split(key)
    w = jax.random.normal(kw, (fan_in, fan_out), jnp.float32) * (1.0 / jnp.sqrt(fan_in))
    b = jax.random.normal(kb, (1, fan_out), jnp.float32) * 0.01
    return w, b


def _init_graphnorm(feat):
    return (jnp.ones((1, feat), jnp.float32),   # gamma
            jnp.zeros((1, feat), jnp.float32),  # beta
            jnp.ones((1, feat), jnp.float32))   # alpha (mean_scale)


def _init_ownlayer(key, in_f, out_f, ef):
    k1, k2, k3, k4 = jax.random.split(key, 4)
    wn = jax.random.normal(k1, (in_f, out_f), jnp.float32) * (1.0 / jnp.sqrt(in_f))
    wm = jax.random.normal(k2, (in_f, out_f), jnp.float32) * (1.0 / jnp.sqrt(in_f))
    we = jax.random.normal(k3, (ef, out_f), jnp.float32) * (1.0 / jnp.sqrt(ef))
    b = jax.random.normal(k4, (1, out_f), jnp.float32) * 0.01
    return wn, wm, we, b


def init_clique_params(key, xf, ef, out):
    keys = jax.random.split(key, 10)
    p = {}
    p["l0"] = _init_linear(keys[0], xf, xf)
    p["l0_2"] = _init_linear(keys[1], xf, _HID)
    p["l0e"] = _init_linear(keys[2], ef, ef)
    p["n"] = _init_graphnorm(xf)
    p["n2"] = _init_graphnorm(ef)
    p["l1"] = _init_ownlayer(keys[3], _HID + xf, _HID, ef)
    p["l2"] = _init_ownlayer(keys[4], _HID + xf, _HID, ef)
    p["l3"] = _init_ownlayer(keys[5], _HID + xf, _HID, ef)
    p["l4"] = _init_ownlayer(keys[6], _HID + xf, _HID, ef)
    p["l5"] = _init_linear(keys[7], _HID, out)
    return p


# ---------------------------- pure-JAX reference ---------------------------- #

def _reference_forward(params, x, edge_index, edge_attr, pickable):
    def lin(v, wb):
        return v @ wb[0] + wb[1]

    def gn(v, gba):
        gamma, beta, alpha = gba
        mean = jnp.mean(v, axis=0, keepdims=True)
        vc = v - alpha * mean
        var = jnp.mean(vc * vc, axis=0, keepdims=True)
        return gamma * vc / jnp.sqrt(var + _EPS) + beta

    n = x.shape[0]
    e_cnt = edge_index.shape[1]
    src, dst = edge_index[0], edge_index[1]
    adj = jnp.zeros((n, n), jnp.float32).at[dst, src].add(1.0)
    inc = jnp.zeros((n, e_cnt), jnp.float32).at[dst, jnp.arange(e_cnt)].add(1.0)

    x1 = jax.nn.relu(lin(gn(lin(x, params["l0"]), params["n"]), params["l0_2"]))
    e = gn(lin(edge_attr, params["l0e"]), params["n2"])
    for name in ("l1", "l2", "l3", "l4"):
        wn, wm, we, b = params[name]
        h = jnp.concatenate([x, x1], axis=1)
        x1 = jax.nn.relu(h @ wn + adj @ (h @ wm) + inc @ (e @ we) + b)
    x1 = lin(x1, params["l5"])[pickable]
    return jax.nn.softmax(x1, axis=1)


# ----------------------------------- main ----------------------------------- #

if __name__ == "__main__":
    xf, ef, out_dim = 16, 8, 4
    n_nodes, n_edges, n_pick = 16, 24, 6

    key = jax.random.PRNGKey(0)
    kp, kx, ke, kei, kpick = jax.random.split(key, 5)

    params = init_clique_params(kp, xf, ef, out_dim)

    x = jax.random.normal(kx, (n_nodes, xf), jnp.float32)
    edge_attr = jax.random.normal(ke, (n_edges, ef), jnp.float32)
    edge_index = jax.random.randint(kei, (2, n_edges), 0, n_nodes, jnp.int32)
    pickable = jax.random.permutation(kpick, n_nodes)[:n_pick].astype(jnp.int32)

    # z / z*edge_index are unused by the reference forward; pass placeholders.
    z = jnp.zeros((n_nodes, xf), jnp.float32)
    z1 = z2 = z3 = edge_index

    y = clique_forward(params, x, z, edge_index, z1, z2, z3, edge_attr, pickable)
    y = jax.block_until_ready(y)

    y_ref = _reference_forward(params, x, edge_index, edge_attr, pickable)

    assert y.shape == (n_pick, out_dim)
    assert bool(jnp.all(jnp.isfinite(y)))
    assert bool(jnp.allclose(jnp.sum(y, axis=1), 1.0, atol=1e-4))
    assert bool(jnp.allclose(y, y_ref, atol=2e-3, rtol=2e-3))
    print("KERNEL_OK")
</pallas_src>

<mosaic_0001>
module attributes {stable_mosaic.version = 11 : i64} {
  func.func @kernel(%arg0: memref<184x128xf32, #tpu.memory_space<vmem>>, %arg1: memref<40x128xf32, #tpu.memory_space<vmem>>, %arg2: memref<40x128xi32, #tpu.memory_space<vmem>>, %arg3: memref<4x10x20xf32, #tpu.memory_space<vmem>>, %arg4: memref<6x4xf32, #tpu.memory_space<vmem>>) attributes {dimension_semantics = [], scalar_prefetch = 0 : i64, scratch_operands = 0 : i64, tpu.core_type = #tpu.core_type<tc>} {
    %c0 = arith.constant 0 : index
    %c0_0 = arith.constant 0 : index
    %0 = vector.load %arg1[%c0, %c0_0] : memref<40x128xf32, #tpu.memory_space<vmem>>, vector<16x16xf32>
    %c16 = arith.constant 16 : index
    %c0_1 = arith.constant 0 : index
    %1 = vector.load %arg1[%c16, %c0_1] : memref<40x128xf32, #tpu.memory_space<vmem>>, vector<24x8xf32>
    %c0_2 = arith.constant 0 : index
    %c0_3 = arith.constant 0 : index
    %2 = vector.load %arg0[%c0_2, %c0_3] : memref<184x128xf32, #tpu.memory_space<vmem>>, vector<16x16xf32>
    %cst = arith.constant dense<0.000000e+00> : vector<16x16xf32>
    %3 = tpu.matmul %0, %2, %cst {dimension_numbers = #tpu.dot_dimension_numbers<[1], [0], [0], [1], [0, 0, 1, 1], [], []>} : vector<16x16xf32>, vector<16x16xf32>, vector<16x16xf32> -> vector<16x16xf32>
    %c16_4 = arith.constant 16 : index
    %c0_5 = arith.constant 0 : index
    %4 = vector.load %arg0[%c16_4, %c0_5] : memref<184x128xf32, #tpu.memory_space<vmem>>, vector<1x16xf32>
    %5 = vector.broadcast %4 : vector<1x16xf32> to vector<16x16xf32>
    %6 = arith.addf %3, %5 : vector<16x16xf32>
    %c24 = arith.constant 24 : index
    %c0_6 = arith.constant 0 : index
    %7 = vector.load %arg0[%c24, %c0_6] : memref<184x128xf32, #tpu.memory_space<vmem>>, vector<1x16xf32>
    %c32 = arith.constant 32 : index
    %c0_7 = arith.constant 0 : index
    %8 = vector.load %arg0[%c32, %c0_7] : memref<184x128xf32, #tpu.memory_space<vmem>>, vector<1x16xf32>
    %c40 = arith.constant 40 : index
    %c0_8 = arith.constant 0 : index
    %9 = vector.load %arg0[%c40, %c0_8] : memref<184x128xf32, #tpu.memory_space<vmem>>, vector<1x16xf32>
    %cst_9 = arith.constant dense<0.000000e+00> : vector<16xf32>
    %10 = vector.multi_reduction <add>, %6, %cst_9 [0] : vector<16x16xf32> to vector<16xf32>
    %11 = vector.shape_cast %10 : vector<16xf32> to vector<1x16xf32>
    %cst_10 = arith.constant 1.600000e+01 : f32
    %12 = vector.broadcast %cst_10 : f32 to vector<1x16xf32>
    %13 = arith.divf %11, %12 : vector<1x16xf32>
    %14 = arith.mulf %9, %13 : vector<1x16xf32>
    %15 = vector.broadcast %14 : vector<1x16xf32> to vector<16x16xf32>
    %16 = arith.subf %6, %15 : vector<16x16xf32>
    %17 = arith.mulf %16, %16 : vector<16x16xf32>
    %cst_11 = arith.constant dense<0.000000e+00> : vector<16xf32>
    %18 = vector.multi_reduction <add>, %17, %cst_11 [0] : vector<16x16xf32> to vector<16xf32>
    %19 = vector.shape_cast %18 : vector<16xf32> to vector<1x16xf32>
    %cst_12 = arith.constant 1.600000e+01 : f32
    %20 = vector.broadcast %cst_12 : f32 to vector<1x16xf32>
    %21 = arith.divf %19, %20 : vector<1x16xf32>
    %22 = vector.broadcast %7 : vector<1x16xf32> to vector<16x16xf32>
    %23 = arith.mulf %22, %16 : vector<16x16xf32>
    %cst_13 = arith.constant 9.99999974E-6 : f32
    %24 = vector.broadcast %cst_13 : f32 to vector<1x16xf32>
    %25 = arith.addf %21, %24 : vector<1x16xf32>
    %26 = math.rsqrt %25 : vector<1x16xf32>
    %27 = vector.broadcast %26 : vector<1x16xf32> to vector<16x16xf32>
    %28 = arith.mulf %23, %27 : vector<16x16xf32>
    %29 = vector.broadcast %8 : vector<1x16xf32> to vector<16x16xf32>
    %30 = arith.addf %28, %29 : vector<16x16xf32>
    %c48 = arith.constant 48 : index
    %c0_14 = arith.constant 0 : index
    %31 = vector.load %arg0[%c48, %c0_14] : memref<184x128xf32, #tpu.memory_space<vmem>>, vector<16x10xf32>
    %cst_15 = arith.constant dense<0.000000e+00> : vector<16x10xf32>
    %32 = tpu.matmul %30, %31, %cst_15 {dimension_numbers = #tpu.dot_dimension_numbers<[1], [0], [0], [1], [0, 0, 1, 1], [], []>} : vector<16x16xf32>, vector<16x10xf32>, vector<16x10xf32> -> vector<16x10xf32>
    %c64 = arith.constant 64 : index
    %c0_16 = arith.constant 0 : index
    %33 = vector.load %arg0[%c64, %c0_16] : memref<184x128xf32, #tpu.memory_space<vmem>>, vector<1x10xf32>
    %34 = vector.broadcast %33 : vector<1x10xf32> to vector<16x10xf32>
    %35 = arith.addf %32, %34 : vector<16x10xf32>
    %cst_17 = arith.constant 0.000000e+00 : f32
    %36 = vector.broadcast %cst_17 : f32 to vector<16x10xf32>
    %37 = arith.maximumf %35, %36 : vector<16x10xf32>
    %c72 = arith.constant 72 : index
    %c0_18 = arith.constant 0 : index
    %38 = vector.load %arg0[%c72, %c0_18] : memref<184x128xf32, #tpu.memory_space<vmem>>, vector<8x8xf32>
    %cst_19 = arith.constant dense<0.000000e+00> : vector<24x8xf32>
    %39 = tpu.matmul %1, %38, %cst_19 {dimension_numbers = #tpu.dot_dimension_numbers<[1], [0], [0], [1], [0, 0, 1, 1], [], []>} : vector<24x8xf32>, vector<8x8xf32>, vector<24x8xf32> -> vector<24x8xf32>
    %c80 = arith.constant 80 : index
    %c0_20 = arith.constant 0 : index
    %40 = vector.load %arg0[%c80, %c0_20] : memref<184x128xf32, #tpu.memory_space<vmem>>, vector<1x8xf32>
    %41 = vector.broadcast %40 : vector<1x8xf32> to vector<24x8xf32>
    %42 = arith.addf %39, %41 : vector<24x8xf32>
    %c88 = arith.constant 88 : index
    %c0_21 = arith.constant 0 : index
    %43 = vector.load %arg0[%c88, %c0_21] : memref<184x128xf32, #tpu.memory_space<vmem>>, vector<1x8xf32>
    %c96 = arith.constant 96 : index
    %c0_22 = arith.constant 0 : index
    %44 = vector.load %arg0[%c96, %c0_22] : memref<184x128xf32, #tpu.memory_space<vmem>>, vector<1x8xf32>
    %c104 = arith.constant 104 : index
    %c0_23 = arith.constant 0 : index
    %45 = vector.load %arg0[%c104, %c0_23] : memref<184x128xf32, #tpu.memory_space<vmem>>, vector<1x8xf32>
    %cst_24 = arith.constant dense<0.000000e+00> : vector<8xf32>
    %46 = vector.multi_reduction <add>, %42, %cst_24 [0] : vector<24x8xf32> to vector<8xf32>
    %47 = vector.shape_cast %46 : vector<8xf32> to vector<1x8xf32>
    %cst_25 = arith.constant 2.400000e+01 : f32
    %48 = vector.broadcast %cst_25 : f32 to vector<1x8xf32>
    %49 = arith.divf %47, %48 : vector<1x8xf32>
    %50 = arith.mulf %45, %49 : vector<1x8xf32>
    %51 = vector.broadcast %50 : vector<1x8xf32> to vector<24x8xf32>
    %52 = arith.subf %42, %51 : vector<24x8xf32>
    %53 = arith.mulf %52, %52 : vector<24x8xf32>
    %cst_26 = arith.constant dense<0.000000e+00> : vector<8xf32>
    %54 = vector.multi_reduction <add>, %53, %cst_26 [0] : vector<24x8xf32> to vector<8xf32>
    %55 = vector.shape_cast %54 : vector<8xf32> to vector<1x8xf32>
    %cst_27 = arith.constant 2.400000e+01 : f32
    %56 = vector.broadcast %cst_27 : f32 to vector<1x8xf32>
    %57 = arith.divf %55, %56 : vector<1x8xf32>
    %58 = vector.broadcast %43 : vector<1x8xf32> to vector<24x8xf32>
    %59 = arith.mulf %58, %52 : vector<24x8xf32>
    %cst_28 = arith.constant 9.99999974E-6 : f32
    %60 = vector.broadcast %cst_28 : f32 to vector<1x8xf32>
    %61 = arith.addf %57, %60 : vector<1x8xf32>
    %62 = math.rsqrt %61 : vector<1x8xf32>
    %63 = vector.broadcast %62 : vector<1x8xf32> to vector<24x8xf32>
    %64 = arith.mulf %59, %63 : vector<24x8xf32>
    %65 = vector.broadcast %44 : vector<1x8xf32> to vector<24x8xf32>
    %66 = arith.addf %64, %65 : vector<24x8xf32>
    %c0_29 = arith.constant 0 : index
    %c0_30 = arith.constant 0 : index
    %67 = vector.load %arg2[%c0_29, %c0_30] : memref<40x128xi32, #tpu.memory_space<vmem>>, vector<1x24xi32>
    %c8 = arith.constant 8 : index
    %c0_31 = arith.constant 0 : index
    %68 = vector.load %arg2[%c8, %c0_31] : memref<40x128xi32, #tpu.memory_space<vmem>>, vector<24x1xi32>
    %c32_32 = arith.constant 32 : index
    %c0_33 = arith.constant 0 : index
    %69 = vector.load %arg2[%c32_32, %c0_33] : memref<40x128xi32, #tpu.memory_space<vmem>>, vector<6x1xi32>
    %70 = tpu.iota {dimensions = array<i32: 0>} : vector<16x24xi32>
    %71 = vector.broadcast %67 : vector<1x24xi32> to vector<16x24xi32>
    %72 = arith.cmpi eq, %70, %71 : vector<16x24xi32>
    %cst_34 = arith.constant 1.000000e+00 : f32
    %cst_35 = arith.constant 0.000000e+00 : f32
    %73 = vector.broadcast %cst_34 : f32 to vector<16x24xf32>
    %74 = vector.broadcast %cst_35 : f32 to vector<16x24xf32>
    %75 = arith.select %72, %73, %74 : vector<16x24xi1>, vector<16x24xf32>
    %76 = tpu.iota {dimensions = array<i32: 1>} : vector<24x16xi32>
    %77 = vector.broadcast %68 : vector<24x1xi32> to vector<24x16xi32>
    %78 = arith.cmpi eq, %76, %77 : vector<24x16xi32>
    %cst_36 = arith.constant 1.000000e+00 : f32
    %cst_37 = arith.constant 0.000000e+00 : f32
    %79 = vector.broadcast %cst_36 : f32 to vector<24x16xf32>
    %80 = vector.broadcast %cst_37 : f32 to vector<24x16xf32>
    %81 = arith.select %78, %79, %80 : vector<24x16xi1>, vector<24x16xf32>
    %cst_38 = arith.constant dense<0.000000e+00> : vector<16x16xf32>
    %82 = tpu.matmul %75, %81, %cst_38 {dimension_numbers = #tpu.dot_dimension_numbers<[1], [0], [0], [1], [0, 0, 1, 1], [], []>} : vector<16x24xf32>, vector<24x16xf32>, vector<16x16xf32> -> vector<16x16xf32>
    %c112 = arith.constant 112 : index
    %c0_39 = arith.constant 0 : index
    %83 = vector.load %arg0[%c112, %c0_39] : memref<184x128xf32, #tpu.memory_space<vmem>>, vector<16x40xf32>
    %cst_40 = arith.constant dense<0.000000e+00> : vector<16x40xf32>
    %84 = tpu.matmul %0, %83, %cst_40 {dimension_numbers = #tpu.dot_dimension_numbers<[1], [0], [0], [1], [0, 0, 1, 1], [], []>} : vector<16x16xf32>, vector<16x40xf32>, vector<16x40xf32> -> vector<16x40xf32>
    %c128 = arith.constant 128 : index
    %c0_41 = arith.constant 0 : index
    %85 = vector.load %arg0[%c128, %c0_41] : memref<184x128xf32, #tpu.memory_space<vmem>>, vector<16x40xf32>
    %cst_42 = arith.constant dense<0.000000e+00> : vector<16x40xf32>
    %86 = tpu.matmul %0, %85, %cst_42 {dimension_numbers = #tpu.dot_dimension_numbers<[1], [0], [0], [1], [0, 0, 1, 1], [], []>} : vector<16x16xf32>, vector<16x40xf32>, vector<16x40xf32> -> vector<16x40xf32>
    %c144 = arith.constant 144 : index
    %c0_43 = arith.constant 0 : index
    %87 = vector.load %arg0[%c144, %c0_43] : memref<184x128xf32, #tpu.memory_space<vmem>>, vector<8x40xf32>
    %cst_44 = arith.constant dense<0.000000e+00> : vector<24x40xf32>
    %88 = tpu.matmul %66, %87, %cst_44 {dimension_numbers = #tpu.dot_dimension_numbers<[1], [0], [0], [1], [0, 0, 1, 1], [], []>} : vector<24x8xf32>, vector<8x40xf32>, vector<24x40xf32> -> vector<24x40xf32>
    %cst_45 = arith.constant dense<0.000000e+00> : vector<16x40xf32>
    %89 = tpu.matmul %75, %88, %cst_45 {dimension_numbers = #tpu.dot_dimension_numbers<[1], [0], [0], [1], [0, 0, 1, 1], [], []>} : vector<16x24xf32>, vector<24x40xf32>, vector<16x40xf32> -> vector<16x40xf32>
    %cst_46 = arith.constant dense<0.000000e+00> : vector<16x40xf32>
    %90 = tpu.matmul %82, %86, %cst_46 {dimension_numbers = #tpu.dot_dimension_numbers<[1], [0], [0], [1], [0, 0, 1, 1], [], []>} : vector<16x16xf32>, vector<16x40xf32>, vector<16x40xf32> -> vector<16x40xf32>
    %91 = arith.addf %84, %90 : vector<16x40xf32>
    %92 = arith.addf %91, %89 : vector<16x40xf32>
    %c152 = arith.constant 152 : index
    %c0_47 = arith.constant 0 : index
    %93 = vector.load %arg0[%c152, %c0_47] : memref<184x128xf32, #tpu.memory_space<vmem>>, vector<1x40xf32>
    %94 = vector.broadcast %93 : vector<1x40xf32> to vector<16x40xf32>
    %95 = arith.addf %92, %94 : vector<16x40xf32>
    %c0_48 = arith.constant 0 : index
    %c0_49 = arith.constant 0 : index
    %c0_50 = arith.constant 0 : index
    %96 = vector.load %arg3[%c0_48, %c0_49, %c0_50] : memref<4x10x20xf32, #tpu.memory_space<vmem>>, vector<1x10x20xf32>
    %97 = vector.shape_cast %96 : vector<1x10x20xf32> to vector<10x20xf32>
    %cst_51 = arith.constant dense<0.000000e+00> : vector<16x20xf32>
    %98 = tpu.matmul %37, %97, %cst_51 {dimension_numbers = #tpu.dot_dimension_numbers<[1], [0], [0], [1], [0, 0, 1, 1], [], []>} : vector<16x10xf32>, vector<10x20xf32>, vector<16x20xf32> -> vector<16x20xf32>
    %99 = vector.extract_strided_slice %95 {offsets = [0, 0], sizes = [16, 10], strides = [1, 1]} : vector<16x40xf32> to vector<16x10xf32>
    %100 = vector.extract_strided_slice %98 {offsets = [0, 0], sizes = [16, 10], strides = [1, 1]} : vector<16x20xf32> to vector<16x10xf32>
    %101 = arith.addf %99, %100 : vector<16x10xf32>
    %102 = vector.extract_strided_slice %98 {offsets = [0, 10], sizes = [16, 10], strides = [1, 1]} : vector<16x20xf32> to vector<16x10xf32>
    %cst_52 = arith.constant dense<0.000000e+00> : vector<16x10xf32>
    %103 = tpu.matmul %82, %102, %cst_52 {dimension_numbers = #tpu.dot_dimension_numbers<[1], [0], [0], [1], [0, 0, 1, 1], [], []>} : vector<16x16xf32>, vector<16x10xf32>, vector<16x10xf32> -> vector<16x10xf32>
    %104 = arith.addf %101, %103 : vector<16x10xf32>
    %cst_53 = arith.constant 0.000000e+00 : f32
    %105 = vector.broadcast %cst_53 : f32 to vector<16x10xf32>
    %106 = arith.maximumf %104, %105 : vector<16x10xf32>
    %c1 = arith.constant 1 : index
    %c0_54 = arith.constant 0 : index
    %c0_55 = arith.constant 0 : index
    %107 = vector.load %arg3[%c1, %c0_54, %c0_55] : memref<4x10x20xf32, #tpu.memory_space<vmem>>, vector<1x10x20xf32>
    %108 = vector.shape_cast %107 : vector<1x10x20xf32> to vector<10x20xf32>
    %cst_56 = arith.constant dense<0.000000e+00> : vector<16x20xf32>
    %109 = tpu.matmul %106, %108, %cst_56 {dimension_numbers = #tpu.dot_dimension_numbers<[1], [0], [0], [1], [0, 0, 1, 1], [], []>} : vector<16x10xf32>, vector<10x20xf32>, vector<16x20xf32> -> vector<16x20xf32>
    %110 = vector.extract_strided_slice %95 {offsets = [0, 10], sizes = [16, 10], strides = [1, 1]} : vector<16x40xf32> to vector<16x10xf32>
    %111 = vector.extract_strided_slice %109 {offsets = [0, 0], sizes = [16, 10], strides = [1, 1]} : vector<16x20xf32> to vector<16x10xf32>
    %112 = arith.addf %110, %111 : vector<16x10xf32>
    %113 = vector.extract_strided_slice %109 {offsets = [0, 10], sizes = [16, 10], strides = [1, 1]} : vector<16x20xf32> to vector<16x10xf32>
    %cst_57 = arith.constant dense<0.000000e+00> : vector<16x10xf32>
    %114 = tpu.matmul %82, %113, %cst_57 {dimension_numbers = #tpu.dot_dimension_numbers<[1], [0], [0], [1], [0, 0, 1, 1], [], []>} : vector<16x16xf32>, vector<16x10xf32>, vector<16x10xf32> -> vector<16x10xf32>
    %115 = arith.addf %112, %114 : vector<16x10xf32>
    %cst_58 = arith.constant 0.000000e+00 : f32
    %116 = vector.broadcast %cst_58 : f32 to vector<16x10xf32>
    %117 = arith.maximumf %115, %116 : vector<16x10xf32>
    %c2 = arith.constant 2 : index
    %c0_59 = arith.constant 0 : index
    %c0_60 = arith.constant 0 : index
    %118 = vector.load %arg3[%c2, %c0_59, %c0_60] : memref<4x10x20xf32, #tpu.memory_space<vmem>>, vector<1x10x20xf32>
    %119 = vector.shape_cast %118 : vector<1x10x20xf32> to vector<10x20xf32>
    %cst_61 = arith.constant dense<0.000000e+00> : vector<16x20xf32>
    %120 = tpu.matmul %117, %119, %cst_61 {dimension_numbers = #tpu.dot_dimension_numbers<[1], [0], [0], [1], [0, 0, 1, 1], [], []>} : vector<16x10xf32>, vector<10x20xf32>, vector<16x20xf32> -> vector<16x20xf32>
    %121 = vector.extract_strided_slice %95 {offsets = [0, 20], sizes = [16, 10], strides = [1, 1]} : vector<16x40xf32> to vector<16x10xf32>
    %122 = vector.extract_strided_slice %120 {offsets = [0, 0], sizes = [16, 10], strides = [1, 1]} : vector<16x20xf32> to vector<16x10xf32>
    %123 = arith.addf %121, %122 : vector<16x10xf32>
    %124 = vector.extract_strided_slice %120 {offsets = [0, 10], sizes = [16, 10], strides = [1, 1]} : vector<16x20xf32> to vector<16x10xf32>
    %cst_62 = arith.constant dense<0.000000e+00> : vector<16x10xf32>
    %125 = tpu.matmul %82, %124, %cst_62 {dimension_numbers = #tpu.dot_dimension_numbers<[1], [0], [0], [1], [0, 0, 1, 1], [], []>} : vector<16x16xf32>, vector<16x10xf32>, vector<16x10xf32> -> vector<16x10xf32>
    %126 = arith.addf %123, %125 : vector<16x10xf32>
    %cst_63 = arith.constant 0.000000e+00 : f32
    %127 = vector.broadcast %cst_63 : f32 to vector<16x10xf32>
    %128 = arith.maximumf %126, %127 : vector<16x10xf32>
    %c3 = arith.constant 3 : index
    %c0_64 = arith.constant 0 : index
    %c0_65 = arith.constant 0 : index
    %129 = vector.load %arg3[%c3, %c0_64, %c0_65] : memref<4x10x20xf32, #tpu.memory_space<vmem>>, vector<1x10x20xf32>
    %130 = vector.shape_cast %129 : vector<1x10x20xf32> to vector<10x20xf32>
    %cst_66 = arith.constant dense<0.000000e+00> : vector<16x20xf32>
    %131 = tpu.matmul %128, %130, %cst_66 {dimension_numbers = #tpu.dot_dimension_numbers<[1], [0], [0], [1], [0, 0, 1, 1], [], []>} : vector<16x10xf32>, vector<10x20xf32>, vector<16x20xf32> -> vector<16x20xf32>
    %132 = vector.extract_strided_slice %95 {offsets = [0, 30], sizes = [16, 10], strides = [1, 1]} : vector<16x40xf32> to vector<16x10xf32>
    %133 = vector.extract_strided_slice %131 {offsets = [0, 0], sizes = [16, 10], strides = [1, 1]} : vector<16x20xf32> to vector<16x10xf32>
    %134 = arith.addf %132, %133 : vector<16x10xf32>
    %135 = vector.extract_strided_slice %131 {offsets = [0, 10], sizes = [16, 10], strides = [1, 1]} : vector<16x20xf32> to vector<16x10xf32>
    %cst_67 = arith.constant dense<0.000000e+00> : vector<16x10xf32>
    %136 = tpu.matmul %82, %135, %cst_67 {dimension_numbers = #tpu.dot_dimension_numbers<[1], [0], [0], [1], [0, 0, 1, 1], [], []>} : vector<16x16xf32>, vector<16x10xf32>, vector<16x10xf32> -> vector<16x10xf32>
    %137 = arith.addf %134, %136 : vector<16x10xf32>
    %cst_68 = arith.constant 0.000000e+00 : f32
    %138 = vector.broadcast %cst_68 : f32 to vector<16x10xf32>
    %139 = arith.maximumf %137, %138 : vector<16x10xf32>
    %c160 = arith.constant 160 : index
    %c0_69 = arith.constant 0 : index
    %140 = vector.load %arg0[%c160, %c0_69] : memref<184x128xf32, #tpu.memory_space<vmem>>, vector<10x4xf32>
    %cst_70 = arith.constant dense<0.000000e+00> : vector<16x4xf32>
    %141 = tpu.matmul %139, %140, %cst_70 {dimension_numbers = #tpu.dot_dimension_numbers<[1], [0], [0], [1], [0, 0, 1, 1], [], []>} : vector<16x10xf32>, vector<10x4xf32>, vector<16x4xf32> -> vector<16x4xf32>
    %c176 = arith.constant 176 : index
    %c0_71 = arith.constant 0 : index
    %142 = vector.load %arg0[%c176, %c0_71] : memref<184x128xf32, #tpu.memory_space<vmem>>, vector<1x4xf32>
    %143 = vector.broadcast %142 : vector<1x4xf32> to vector<16x4xf32>
    %144 = arith.addf %141, %143 : vector<16x4xf32>
    %cst_72 = arith.constant dense<0xFF800000> : vector<16xf32>
    %145 = vector.multi_reduction <maximumf>, %144, %cst_72 [1] : vector<16x4xf32> to vector<16xf32>
    %146 = vector.shape_cast %145 : vector<16xf32> to vector<16x1xf32>
    %147 = vector.broadcast %146 : vector<16x1xf32> to vector<16x4xf32>
    %148 = arith.subf %144, %147 : vector<16x4xf32>
    %149 = math.exp %148 : vector<16x4xf32>
    %cst_73 = arith.constant dense<0.000000e+00> : vector<16xf32>
    %150 = vector.multi_reduction <add>, %149, %cst_73 [1] : vector<16x4xf32> to vector<16xf32>
    %151 = vector.shape_cast %150 : vector<16xf32> to vector<16x1xf32>
    %152 = vector.broadcast %151 : vector<16x1xf32> to vector<16x4xf32>
    %153 = arith.divf %149, %152 : vector<16x4xf32>
    %154 = tpu.iota {dimensions = array<i32: 1>} : vector<6x16xi32>
    %155 = vector.broadcast %69 : vector<6x1xi32> to vector<6x16xi32>
    %156 = arith.cmpi eq, %154, %155 : vector<6x16xi32>
    %cst_74 = arith.constant 1.000000e+00 : f32
    %cst_75 = arith.constant 0.000000e+00 : f32
    %157 = vector.broadcast %cst_74 : f32 to vector<6x16xf32>
    %158 = vector.broadcast %cst_75 : f32 to vector<6x16xf32>
    %159 = arith.select %156, %157, %158 : vector<6x16xi1>, vector<6x16xf32>
    %cst_76 = arith.constant dense<0.000000e+00> : vector<6x4xf32>
    %160 = tpu.matmul %159, %153, %cst_76 {dimension_numbers = #tpu.dot_dimension_numbers<[1], [0], [0], [1], [0, 0, 1, 1], [], []>} : vector<6x16xf32>, vector<16x4xf32>, vector<6x4xf32> -> vector<6x4xf32>
    %c0_77 = arith.constant 0 : index
    %c0_78 = arith.constant 0 : index
    %161 = vector.load %arg4[%c0_77, %c0_78] : memref<6x4xf32, #tpu.memory_space<vmem>>, vector<6x4xf32>
    tpu.vector_store %arg4[%c0_77, %c0_78], %160 {strides = array<i32>} : memref<6x4xf32, #tpu.memory_space<vmem>>, vector<6x4xf32>,
    return
  }
}

</mosaic_0001>

<llo_original>
// kernel: tpu_custom_call.1
$region0: #{tpu_custom_call.1}
  #allocation0 [shape = 'u32[]', space=smem, size = 0x4, offset = 0x4, fixed_abs, tag = 'smem constant byte address 0x4 - core index']
  #allocation1 [shape = 'u32[144,128]{1,0:T(1,128)}', space=vmem, size = 0x12000, scoped, tag = 'internal scratch']
  %s0 = inlined_call_operand.hbm [shape: f32[184,128], index: 0, kind: input, shape index: {}]
  %s1 = inlined_call_operand.vmem [shape: f32[40,128], index: 1, kind: input, shape index: {}]
  %s2 = inlined_call_operand.vmem [shape: s32[40,128], index: 2, kind: input, shape index: {}]
  %s3 = inlined_call_operand.vmem [shape: f32[4,10,20], index: 3, kind: input, shape index: {}]
  %s4 = inlined_call_operand.vmem [shape: f32[6,4], index: 4, kind: output, shape index: {}]
  %s5 = sld [smem:[#allocation0]]
  $region30: #{tpu_custom_call.1} parent=0
    _
  %s7 = ssub.s32 1, %s5
  %s8 = scalar_select 0, %s7, %s5
  $region1: #{tpu_custom_call.1} parent=0
    #allocation2 [shape = 'u8[94208]{0}', space=vmem, size = 0x17000, scoped, tag = 'input window, operand 0, single buffered']
    #allocation3 [shape = 's32[1]{0}', space=sflag, size = 0x4, scoped, tag = 'scoped memory for tpu_custom_call.1']
    %9 = vsyncpa [#allocation3], 0
    // Predicated region
    $region2: #{tpu_custom_call.1} parent=1 // pred_check
      _
    $region3: #{tpu_custom_call.1} parent=1 // pred_check_branch
      %11 = sbr.rel (0) target = $region5
    $region4: #{tpu_custom_call.1} parent=1 // pred_region
      %s13 = ssub.s32 2944, 2944
      %14 = vsyncadd [#allocation3], %s13
      %s15 = sshll.u32 [#allocation2], 4
      %s16 = int_to_ptr.vmem [resolvable:$true] %s15
      %21 = dma.hbm_to_vmem [thread:$0]  %s0, 2944, %s16, [#allocation3], 128, 128, 8
    $region5: #{tpu_custom_call.1} parent=1 // pred_fallthru
      _
    // Predicated region
    $region6: #{tpu_custom_call.1} parent=1 // pred_check
      _
    $region7: #{tpu_custom_call.1} parent=1 // pred_check_branch
      %23 = sbr.rel (0) target = $region9
    $region8: #{tpu_custom_call.1} parent=1 // pred_region
      _
    $region9: #{tpu_custom_call.1} parent=1 // pred_fallthru
      _
    // Predicated region
    $region10: #{tpu_custom_call.1} parent=1 // pred_check
      _
    $region11: #{tpu_custom_call.1} parent=1 // pred_check_branch
      %25 = sbr.rel (0) target = $region13
    $region12: #{tpu_custom_call.1} parent=1 // pred_region
      _
    $region13: #{tpu_custom_call.1} parent=1 // pred_fallthru
      _
    // Predicated region
    $region14: #{tpu_custom_call.1} parent=1 // pred_check
      _
    $region15: #{tpu_custom_call.1} parent=1 // pred_check_branch
      %27 = sbr.rel (0) target = $region17
    $region16: #{tpu_custom_call.1} parent=1 // pred_region
      _
    $region17: #{tpu_custom_call.1} parent=1 // pred_fallthru
      _
    // Predicated region
    $region18: #{tpu_custom_call.1} parent=1 // pred_check
      _
    $region19: #{tpu_custom_call.1} parent=1 // pred_check_branch
      %29 = sbr.rel (0) target = $region21
    $region20: #{tpu_custom_call.1} parent=1 // pred_region
      %30 = dma.done [#allocation3], 2944
    $region21: #{tpu_custom_call.1} parent=1 // pred_fallthru
      _
    %v31 = vld [vmem:[%s1] sm:$0xff]
    %v32 = vld [vmem:[%s1 + $0x8] sm:$0xff]
    %v33 = vld [vmem:[%s1 + $0x10] sm:$0xff]
    %v34 = vld [vmem:[%s1 + $0x18] sm:$0xff]
    %v35 = vld [vmem:[%s1 + $0x20] sm:$0xff]
    %v36 = vld [vmem:[#allocation2] sm:$0xff]
    %v37 = vld [vmem:[#allocation2 + $0x8] sm:$0xff]
    %v38 = vld [vmem:[#allocation2 + $0x10] sm:$0x1]
    %v39 = vlaneseq
    %v40 = vshrl.u32 %v39, 7
    %v41 = vsub.s32 0, %v40
    %v42 = vrot.slane %v38, %v41
    %vm43 = vcmask 130048
    %v45 = vsel %vm43, %v31, 0
    %v48 = vsel %vm43, %v32, 0
    %50 = vmatprep.subr.mxu0 0.0
    %51 = vmatpush1.msra.mxu0 %v36
    %52 = vmatprep.subr.mxu0 0.0
    %53 = vmatpush1.msra.mxu0 %v37
    %54 = vmatprep.subr.mxu0 0.0
    %55 = vmatpush1.msra.mxu0 0.0
    %56 = vmatprep.subr.mxu0 0.0
    %57 = vmatpush1.msra.mxu0 0.0
    %58 = vmatprep.subr.mxu0 0.0
    %59 = vmatpush1.msra.mxu0 0.0
    %60 = vmatprep.subr.mxu0 0.0
    %61 = vmatpush1.msra.mxu0 0.0
    %62 = vmatprep.subr.mxu0 0.0
    %63 = vmatpush1.msra.mxu0 0.0
    %64 = vmatprep.subr.mxu0 0.0
    %65 = vmatpush1.msra.mxu0 0.0
    %66 = vmatprep.subr.mxu0 0.0
    %67 = vmatpush1.msra.mxu0 0.0
    %68 = vmatprep.subr.mxu0 0.0
    %69 = vmatpush1.msra.mxu0 0.0
    %70 = vmatprep.subr.mxu0 0.0
    %71 = vmatpush1.msra.mxu0 0.0
    %72 = vmatprep.subr.mxu0 0.0
    %73 = vmatpush1.msra.mxu0 0.0
    %74 = vmatprep.subr.mxu0 0.0
    %75 = vmatpush1.msra.mxu0 0.0
    %76 = vmatprep.subr.mxu0 0.0
    %77 = vmatpush1.msra.mxu0 0.0
    %78 = vmatprep.subr.mxu0 0.0
    %79 = vmatpush1.msra.mxu0 0.0
    %80 = vmatprep.subr.mxu0 0.0
    %81 = vmatpush1.msra.mxu0 0.0
    %82 = vmatprep.subr.mxu0 0.0
    %83 = vmatpush1.msra.mxu0 0.0
    %84 = vmatprep.subr.mxu0 0.0
    %85 = vmatpush1.msra.mxu0 0.0
    %86 = vmatprep.subr.mxu0 0.0
    %87 = vmatpush1.msra.mxu0 0.0
    %88 = vmatprep.subr.mxu0 0.0
    %89 = vmatpush1.msra.mxu0 0.0
    %90 = vmatprep.subr.mxu0 0.0
    %91 = vmatpush1.msra.mxu0 0.0
    %92 = vmatprep.subr.mxu0 0.0
    %93 = vmatpush1.msra.mxu0 0.0
    %94 = vmatprep.subr.mxu0 0.0
    %95 = vmatpush1.msra.mxu0 0.0
    %96 = vmatprep.subr.mxu0 0.0
    %97 = vmatpush1.msra.mxu0 0.0
    %98 = vmatprep.subr.mxu0 0.0
    %99 = vmatpush1.msra.mxu0 0.0
    %100 = vmatprep.subr.mxu0 0.0
    %101 = vmatpush1.msra.mxu0 0.0
    %102 = vmatprep.subr.mxu0 0.0
    %103 = vmatpush1.msra.mxu0 0.0
    %104 = vmatprep.subr.mxu0 0.0
    %105 = vmatpush1.msra.mxu0 0.0
    %106 = vmatprep.subr.mxu0 0.0
    %107 = vmatpush1.msra.mxu0 0.0
    %108 = vmatprep.subr.mxu0 0.0
    %109 = vmatpush1.msra.mxu0 0.0
    %110 = vmatprep.subr.mxu0 0.0
    %111 = vmatpush1.msra.mxu0 0.0
    %112 = vmatprep.subr.mxu0 0.0
    %113 = vmatpush1.msra.mxu0 0.0
    %114 = vmatprep.mubr.f32.mxu0 0.0
    %115 = vmatmul.mubr.f32.gmra.mrb[0].mxu0 %v45
    %v116 = vpop.f32.mrb[0].mxu0
    %v117 = vadd.f32 %v42, %v116
    %v118 = vpop.f32.mrb[0].mxu0
    %119 = vmatprep.mubr.f32.mxu0 0.0
    %120 = vmatmul.mubr.f32.gmra.mrb[0].mxu0 %v48
    %v121 = vpop.f32.mrb[0].mxu0
    %v122 = vadd.f32 %v42, %v121
    %v123 = vpop.f32.mrb[0].mxu0
    %124 = vdwg.mxu0
    %v125 = vld [vmem:[#allocation2 + $0x18] sm:$0x1]
    %v126 = vld [vmem:[#allocation2 + $0x20] sm:$0x1]
    %v127 = vld [vmem:[#allocation2 + $0x28] sm:$0x1]
    %v128 = vsel %vm43, %v117, 0.0
    %v129 = vsel %vm43, %v122, 0.0
    %v130 = vadd.f32 %v128, %v129
    %v131 = vrot.slane %v130, 4
    %v132 = vadd.f32 %v130, %v131
    %v133 = vrot.slane %v132, 2
    %v134 = vadd.f32 %v132, %v133
    %v135 = vrot.slane %v134, 1
    %v136 = vadd.f32 %v134, %v135
    %v137 = vrcp.pop 16.0
    %v138 = vmul.f32 %v136, %v137
    %v139 = vmul.f32 %v127, %v138
    %v140 = vlaneseq
    %v141 = vshrl.u32 %v140, 7
    %v142 = vsub.s32 0, %v141
    %v143 = vrot.slane %v139, %v142
    %v144 = vsub.f32 %v117, %v143
    %v145 = vsub.f32 %v122, %v143
    %v146 = vmul.f32 %v144, %v144
    %v147 = vmul.f32 %v145, %v145
    %v148 = vsel %vm43, %v146, 0.0
    %v149 = vsel %vm43, %v147, 0.0
    %v150 = vadd.f32 %v148, %v149
    %v151 = vrot.slane %v150, 4
    %v152 = vadd.f32 %v150, %v151
    %v153 = vrot.slane %v152, 2
    %v154 = vadd.f32 %v152, %v153
    %v155 = vrot.slane %v154, 1
    %v156 = vadd.f32 %v154, %v155
    %v157 = vmul.f32 %v156, %v137
    %v158 = vlaneseq
    %v159 = vshrl.u32 %v158, 7
    %v160 = vsub.s32 0, %v159
    %v161 = vrot.slane %v125, %v160
    %v162 = vmul.f32 %v161, %v144
    %v163 = vmul.f32 %v161, %v145
    %v164 = vadd.f32 %v157, 1e-05
    %v165 = vrsqrt.pop %v164
    %v166 = vmul.f32 %v162, %v165
    %v167 = vmul.f32 %v163, %v165
    %v168 = vlaneseq
    %v169 = vshrl.u32 %v168, 7
    %v170 = vsub.s32 0, %v169
    %v171 = vrot.slane %v126, %v170
    %v172 = vadd.f32 %v166, %v171
    %v173 = vadd.f32 %v167, %v171
    %v174 = vld [vmem:[#allocation2 + $0x30] sm:$0xff]
    %v175 = vld [vmem:[#allocation2 + $0x38] sm:$0xff]
    %v176 = vld [vmem:[#allocation2 + $0x40] sm:$0x1]
    %v177 = vlaneseq
    %v178 = vshrl.u32 %v177, 7
    %v179 = vsub.s32 0, %v178
    %v180 = vrot.slane %v176, %v179
    %v182 = vsel %vm43, %v172, 0
    %v185 = vsel %vm43, %v173, 0
    %187 = vmatprep.subr.mxu0 0.0
    %188 = vmatpush1.msra.mxu0 %v174
    %189 = vmatprep.subr.mxu0 0.0
    %190 = vmatpush1.msra.mxu0 %v175
    %191 = vmatprep.subr.mxu0 0.0
    %192 = vmatpush1.msra.mxu0 0.0
    %193 = vmatprep.subr.mxu0 0.0
    %194 = vmatpush1.msra.mxu0 0.0
    %195 = vmatprep.subr.mxu0 0.0
    %196 = vmatpush1.msra.mxu0 0.0
    %197 = vmatprep.subr.mxu0 0.0
    %198 = vmatpush1.msra.mxu0 0.0
    %199 = vmatprep.subr.mxu0 0.0
    %200 = vmatpush1.msra.mxu0 0.0
    %201 = vmatprep.subr.mxu0 0.0
    %202 = vmatpush1.msra.mxu0 0.0
    %203 = vmatprep.subr.mxu0 0.0
    %204 = vmatpush1.msra.mxu0 0.0
    %205 = vmatprep.subr.mxu0 0.0
    %206 = vmatpush1.msra.mxu0 0.0
    %207 = vmatprep.subr.mxu0 0.0
    %208 = vmatpush1.msra.mxu0 0.0
    %209 = vmatprep.subr.mxu0 0.0
    %210 = vmatpush1.msra.mxu0 0.0
    %211 = vmatprep.subr.mxu0 0.0
    %212 = vmatpush1.msra.mxu0 0.0
    %213 = vmatprep.subr.mxu0 0.0
    %214 = vmatpush1.msra.mxu0 0.0
    %215 = vmatprep.subr.mxu0 0.0
    %216 = vmatpush1.msra.mxu0 0.0
    %217 = vmatprep.subr.mxu0 0.0
    %218 = vmatpush1.msra.mxu0 0.0
    %219 = vmatprep.subr.mxu0 0.0
    %220 = vmatpush1.msra.mxu0 0.0
    %221 = vmatprep.subr.mxu0 0.0
    %222 = vmatpush1.msra.mxu0 0.0
    %223 = vmatprep.subr.mxu0 0.0
    %224 = vmatpush1.msra.mxu0 0.0
    %225 = vmatprep.subr.mxu0 0.0
    %226 = vmatpush1.msra.mxu0 0.0
    %227 = vmatprep.subr.mxu0 0.0
    %228 = vmatpush1.msra.mxu0 0.0
    %229 = vmatprep.subr.mxu0 0.0
    %230 = vmatpush1.msra.mxu0 0.0
    %231 = vmatprep.subr.mxu0 0.0
    %232 = vmatpush1.msra.mxu0 0.0
    %233 = vmatprep.subr.mxu0 0.0
    %234 = vmatpush1.msra.mxu0 0.0
    %235 = vmatprep.subr.mxu0 0.0
    %236 = vmatpush1.msra.mxu0 0.0
    %237 = vmatprep.subr.mxu0 0.0
    %238 = vmatpush1.msra.mxu0 0.0
    %239 = vmatprep.subr.mxu0 0.0
    %240 = vmatpush1.msra.mxu0 0.0
    %241 = vmatprep.subr.mxu0 0.0
    %242 = vmatpush1.msra.mxu0 0.0
    %243 = vmatprep.subr.mxu0 0.0
    %244 = vmatpush1.msra.mxu0 0.0
    %245 = vmatprep.subr.mxu0 0.0
    %246 = vmatpush1.msra.mxu0 0.0
    %247 = vmatprep.subr.mxu0 0.0
    %248 = vmatpush1.msra.mxu0 0.0
    %249 = vmatprep.subr.mxu0 0.0
    %250 = vmatpush1.msra.mxu0 0.0
    %251 = vmatprep.mubr.f32.mxu0 0.0
    %252 = vmatmul.mubr.f32.gmra.mrb[0].mxu0 %v182
    %v253 = vpop.f32.mrb[0].mxu0
    %v254 = vadd.f32 %v180, %v253
    %v255 = vpop.f32.mrb[0].mxu0
    %256 = vmatprep.mubr.f32.mxu0 0.0
    %257 = vmatmul.mubr.f32.gmra.mrb[0].mxu0 %v185
    %v258 = vpop.f32.mrb[0].mxu0
    %v259 = vadd.f32 %v180, %v258
    %v260 = vpop.f32.mrb[0].mxu0
    %261 = vdwg.mxu0
    %v262 = vmax.f32 %v254, 0.0
    %v263 = vmax.f32 %v259, 0.0
    %v264 = vld [vmem:[#allocation2 + $0x48] sm:$0xff]
    %v265 = vld [vmem:[#allocation2 + $0x50] sm:$0x1]
    %v266 = vlaneseq
    %v267 = vshrl.u32 %v266, 7
    %v268 = vsub.s32 0, %v267
    %v269 = vrot.slane %v265, %v268
    %vm270 = vcmask 64512
    %v272 = vsel %vm270, %v33, 0
    %v275 = vsel %vm270, %v34, 0
    %v278 = vsel %vm270, %v35, 0
    %280 = vmatprep.subr.mxu0 0.0
    %281 = vmatpush1.msra.mxu0 %v264
    %282 = vmatprep.subr.mxu0 0.0
    %283 = vmatpush1.msra.mxu0 0.0
    %284 = vmatprep.subr.mxu0 0.0
    %285 = vmatpush1.msra.mxu0 0.0
    %286 = vmatprep.subr.mxu0 0.0
    %287 = vmatpush1.msra.mxu0 0.0
    %288 = vmatprep.subr.mxu0 0.0
    %289 = vmatpush1.msra.mxu0 0.0
    %290 = vmatprep.subr.mxu0 0.0
    %291 = vmatpush1.msra.mxu0 0.0
    %292 = vmatprep.subr.mxu0 0.0
    %293 = vmatpush1.msra.mxu0 0.0
    %294 = vmatprep.subr.mxu0 0.0
    %295 = vmatpush1.msra.mxu0 0.0
    %296 = vmatprep.subr.mxu0 0.0
    %297 = vmatpush1.msra.mxu0 0.0
    %298 = vmatprep.subr.mxu0 0.0
    %299 = vmatpush1.msra.mxu0 0.0
    %300 = vmatprep.subr.mxu0 0.0
    %301 = vmatpush1.msra.mxu0 0.0
    %302 = vmatprep.subr.mxu0 0.0
    %303 = vmatpush1.msra.mxu0 0.0
    %304 = vmatprep.subr.mxu0 0.0
    %305 = vmatpush1.msra.mxu0 0.0
    %306 = vmatprep.subr.mxu0 0.0
    %307 = vmatpush1.msra.mxu0 0.0
    %308 = vmatprep.subr.mxu0 0.0
    %309 = vmatpush1.msra.mxu0 0.0
    %310 = vmatprep.subr.mxu0 0.0
    %311 = vmatpush1.msra.mxu0 0.0
    %312 = vmatprep.subr.mxu0 0.0
    %313 = vmatpush1.msra.mxu0 0.0
    %314 = vmatprep.subr.mxu0 0.0
    %315 = vmatpush1.msra.mxu0 0.0
    %316 = vmatprep.subr.mxu0 0.0
    %317 = vmatpush1.msra.mxu0 0.0
    %318 = vmatprep.subr.mxu0 0.0
    %319 = vmatpush1.msra.mxu0 0.0
    %320 = vmatprep.subr.mxu0 0.0
    %321 = vmatpush1.msra.mxu0 0.0
    %322 = vmatprep.subr.mxu0 0.0
    %323 = vmatpush1.msra.mxu0 0.0
    %324 = vmatprep.subr.mxu0 0.0
    %325 = vmatpush1.msra.mxu0 0.0
    %326 = vmatprep.subr.mxu0 0.0
    %327 = vmatpush1.msra.mxu0 0.0
    %328 = vmatprep.subr.mxu0 0.0
    %329 = vmatpush1.msra.mxu0 0.0
    %330 = vmatprep.subr.mxu0 0.0
    %331 = vmatpush1.msra.mxu0 0.0
    %332 = vmatprep.subr.mxu0 0.0
    %333 = vmatpush1.msra.mxu0 0.0
    %334 = vmatprep.subr.mxu0 0.0
    %335 = vmatpush1.msra.mxu0 0.0
    %336 = vmatprep.subr.mxu0 0.0
    %337 = vmatpush1.msra.mxu0 0.0
    %338 = vmatprep.subr.mxu0 0.0
    %339 = vmatpush1.msra.mxu0 0.0
    %340 = vmatprep.subr.mxu0 0.0
    %341 = vmatpush1.msra.mxu0 0.0
    %342 = vmatprep.subr.mxu0 0.0
    %343 = vmatpush1.msra.mxu0 0.0
    %344 = vmatprep.mubr.f32.mxu0 0.0
    %345 = vmatmul.mubr.f32.gmra.mrb[0].mxu0 %v272
    %v346 = vpop.f32.mrb[0].mxu0
    %v347 = vadd.f32 %v269, %v346
    %v348 = vpop.f32.mrb[0].mxu0
    %349 = vmatprep.mubr.f32.mxu0 0.0
    %350 = vmatmul.mubr.f32.gmra.mrb[0].mxu0 %v275
    %v351 = vpop.f32.mrb[0].mxu0
    %v352 = vadd.f32 %v269, %v351
    %v353 = vpop.f32.mrb[0].mxu0
    %354 = vmatprep.mubr.f32.mxu0 0.0
    %355 = vmatmul.mubr.f32.gmra.mrb[0].mxu0 %v278
    %v356 = vpop.f32.mrb[0].mxu0
    %v357 = vadd.f32 %v269, %v356
    %v358 = vpop.f32.mrb[0].mxu0
    %359 = vdwg.mxu0
    %v360 = vld [vmem:[#allocation2 + $0x58] sm:$0x1]
    %v361 = vld [vmem:[#allocation2 + $0x60] sm:$0x1]
    %v362 = vld [vmem:[#allocation2 + $0x68] sm:$0x1]
    %v363 = vsel %vm270, %v347, 0.0
    %v364 = vsel %vm270, %v352, 0.0
    %v365 = vadd.f32 %v363, %v364
    %v366 = vsel %vm270, %v357, 0.0
    %v367 = vadd.f32 %v365, %v366
    %v368 = vrot.slane %v367, 4
    %v369 = vadd.f32 %v367, %v368
    %v370 = vrot.slane %v369, 2
    %v371 = vadd.f32 %v369, %v370
    %v372 = vrot.slane %v371, 1
    %v373 = vadd.f32 %v371, %v372
    %v374 = vrcp.pop 24.0
    %v375 = vmul.f32 %v373, %v374
    %v376 = vmul.f32 %v362, %v375
    %v377 = vlaneseq
    %v378 = vshrl.u32 %v377, 7
    %v379 = vsub.s32 0, %v378
    %v380 = vrot.slane %v376, %v379
    %v381 = vsub.f32 %v347, %v380
    %v382 = vsub.f32 %v352, %v380
    %v383 = vsub.f32 %v357, %v380
    %v384 = vmul.f32 %v381, %v381
    %v385 = vmul.f32 %v382, %v382
    %v386 = vmul.f32 %v383, %v383
    %v387 = vsel %vm270, %v384, 0.0
    %v388 = vsel %vm270, %v385, 0.0
    %v389 = vadd.f32 %v387, %v388
    %v390 = vsel %vm270, %v386, 0.0
    %v391 = vadd.f32 %v389, %v390
    %v392 = vrot.slane %v391, 4
    %v393 = vadd.f32 %v391, %v392
    %v394 = vrot.slane %v393, 2
    %v395 = vadd.f32 %v393, %v394
    %v396 = vrot.slane %v395, 1
    %v397 = vadd.f32 %v395, %v396
    %v398 = vmul.f32 %v397, %v374
    %v399 = vlaneseq
    %v400 = vshrl.u32 %v399, 7
    %v401 = vsub.s32 0, %v400
    %v402 = vrot.slane %v360, %v401
    %v403 = vmul.f32 %v402, %v381
    %v404 = vmul.f32 %v402, %v382
    %v405 = vmul.f32 %v402, %v383
    %v406 = vadd.f32 %v398, 1e-05
    %v407 = vrsqrt.pop %v406
    %v408 = vmul.f32 %v403, %v407
    %v409 = vmul.f32 %v404, %v407
    %v410 = vmul.f32 %v405, %v407
    %v411 = vlaneseq
    %v412 = vshrl.u32 %v411, 7
    %v413 = vsub.s32 0, %v412
    %v414 = vrot.slane %v361, %v413
    %v415 = vadd.f32 %v408, %v414
    %v416 = vadd.f32 %v409, %v414
    %v417 = vadd.f32 %v410, %v414
    %v418 = vld [vmem:[%s2] sm:$0x1]
    %v419 = vld [vmem:[%s2 + $0x8] sm:$0xff]
    %v420 = vld [vmem:[%s2 + $0x10] sm:$0xff]
    %v421 = vld [vmem:[%s2 + $0x18] sm:$0xff]
    %v422 = vld [vmem:[%s2 + $0x20] sm:$0x3f]
    %v423 = vlaneseq
    %v424 = vshrl.u32 %v423, 7
    %v425 = vadd.s32 %v424, 8
    %v426 = vlaneseq
    %v427 = vshrl.u32 %v426, 7
    %v428 = vsub.s32 0, %v427
    %v429 = vrot.slane %v418, %v428
    %vm430 = vcmp.eq.s32.totalorder %v424, %v429
    %vm431 = vcmp.eq.s32.totalorder %v425, %v429
    %v432 = vsel %vm430, 1.0, 0.0
    %v433 = vsel %vm431, 1.0, 0.0
    %v434 = vlaneseq
    %v435 = vand.u32 %v434, 127
    %436 = vset.pattern.permute.xlu0 0
    %437 = vperm.xlu0 %436, %v419
    %v438 = vpop.permute.xlu0 %437
    %439 = vset.pattern.permute.xlu0 0
    %440 = vperm.xlu0 %439, %v420
    %v441 = vpop.permute.xlu0 %440
    %442 = vset.pattern.permute.xlu0 0
    %443 = vperm.xlu0 %442, %v421
    %v444 = vpop.permute.xlu0 %443
    %vm445 = vcmp.eq.s32.totalorder %v435, %v438
    %vm446 = vcmp.eq.s32.totalorder %v435, %v441
    %vm447 = vcmp.eq.s32.totalorder %v435, %v444
    %v448 = vsel %vm445, 1.0, 0.0
    %v449 = vsel %vm446, 1.0, 0.0
    %v450 = vsel %vm447, 1.0, 0.0
    %vm451 = vcmask 195584
    %v453 = vsel %vm451, %v432, 0
    %v456 = vsel %vm451, %v433, 0
    %458 = vmatprep.subr.mxu0 0.0
    %459 = vmatpush1.msra.mxu0 %v448
    %460 = vmatprep.subr.mxu0 0.0
    %461 = vmatpush1.msra.mxu0 %v449
    %462 = vmatprep.subr.mxu0 0.0
    %463 = vmatpush1.msra.mxu0 %v450
    %464 = vmatprep.subr.mxu0 0.0
    %465 = vmatpush1.msra.mxu0 0.0
    %466 = vmatprep.subr.mxu0 0.0
    %467 = vmatpush1.msra.mxu0 0.0
    %468 = vmatprep.subr.mxu0 0.0
    %469 = vmatpush1.msra.mxu0 0.0
    %470 = vmatprep.subr.mxu0 0.0
    %471 = vmatpush1.msra.mxu0 0.0
    %472 = vmatprep.subr.mxu0 0.0
    %473 = vmatpush1.msra.mxu0 0.0
    %474 = vmatprep.subr.mxu0 0.0
    %475 = vmatpush1.msra.mxu0 0.0
    %476 = vmatprep.subr.mxu0 0.0
    %477 = vmatpush1.msra.mxu0 0.0
    %478 = vmatprep.subr.mxu0 0.0
    %479 = vmatpush1.msra.mxu0 0.0
    %480 = vmatprep.subr.mxu0 0.0
    %481 = vmatpush1.msra.mxu0 0.0
    %482 = vmatprep.subr.mxu0 0.0
    %483 = vmatpush1.msra.mxu0 0.0
    %484 = vmatprep.subr.mxu0 0.0
    %485 = vmatpush1.msra.mxu0 0.0
    %486 = vmatprep.subr.mxu0 0.0
    %487 = vmatpush1.msra.mxu0 0.0
    %488 = vmatprep.subr.mxu0 0.0
    %489 = vmatpush1.msra.mxu0 0.0
    %490 = vmatprep.subr.mxu0 0.0
    %491 = vmatpush1.msra.mxu0 0.0
    %492 = vmatprep.subr.mxu0 0.0
    %493 = vmatpush1.msra.mxu0 0.0
    %494 = vmatprep.subr.mxu0 0.0
    %495 = vmatpush1.msra.mxu0 0.0
    %496 = vmatprep.subr.mxu0 0.0
    %497 = vmatpush1.msra.mxu0 0.0
    %498 = vmatprep.subr.mxu0 0.0
    %499 = vmatpush1.msra.mxu0 0.0
    %500 = vmatprep.subr.mxu0 0.0
    %501 = vmatpush1.msra.mxu0 0.0
    %502 = vmatprep.subr.mxu0 0.0
    %503 = vmatpush1.msra.mxu0 0.0
    %504 = vmatprep.subr.mxu0 0.0
    %505 = vmatpush1.msra.mxu0 0.0
    %506 = vmatprep.subr.mxu0 0.0
    %507 = vmatpush1.msra.mxu0 0.0
    %508 = vmatprep.subr.mxu0 0.0
    %509 = vmatpush1.msra.mxu0 0.0
    %510 = vmatprep.subr.mxu0 0.0
    %511 = vmatpush1.msra.mxu0 0.0
    %512 = vmatprep.subr.mxu0 0.0
    %513 = vmatpush1.msra.mxu0 0.0
    %514 = vmatprep.subr.mxu0 0.0
    %515 = vmatpush1.msra.mxu0 0.0
    %516 = vmatprep.subr.mxu0 0.0
    %517 = vmatpush1.msra.mxu0 0.0
    %518 = vmatprep.subr.mxu0 0.0
    %519 = vmatpush1.msra.mxu0 0.0
    %520 = vmatprep.subr.mxu0 0.0
    %521 = vmatpush1.msra.mxu0 0.0
    %522 = vmatprep.mubr.f32.mxu0 0.0
    %523 = vmatmul.mubr.f32.gmra.mrb[0].mxu0 %v453
    %v524 = vpop.f32.mrb[0].mxu0
    %v525 = vadd.f32 0.0, %v524
    %v526 = vpop.f32.mrb[0].mxu0
    %527 = vmatprep.mubr.f32.mxu0 0.0
    %528 = vmatmul.mubr.f32.gmra.mrb[0].mxu0 %v456
    %v529 = vpop.f32.mrb[0].mxu0
    %v530 = vadd.f32 0.0, %v529
    %v531 = vpop.f32.mrb[0].mxu0
    %532 = vdwg.mxu0
    %v533 = vld [vmem:[#allocation2 + $0x70] sm:$0xff]
    %v534 = vld [vmem:[#allocation2 + $0x78] sm:$0xff]
    %v535 = vld [vmem:[#allocation2 + $0x80] sm:$0xff]
    %v536 = vld [vmem:[#allocation2 + $0x88] sm:$0xff]
    %537 = vmatprep.subr.mxu0 0.0
    %538 = vmatpush1.msra.mxu0 %v535
    %539 = vmatprep.subr.mxu0 0.0
    %540 = vmatpush1.msra.mxu0 %v536
    %541 = vmatprep.subr.mxu0 0.0
    %542 = vmatpush1.msra.mxu0 0.0
    %543 = vmatprep.subr.mxu0 0.0
    %544 = vmatpush1.msra.mxu0 0.0
    %545 = vmatprep.subr.mxu0 0.0
    %546 = vmatpush1.msra.mxu0 0.0
    %547 = vmatprep.subr.mxu0 0.0
    %548 = vmatpush1.msra.mxu0 0.0
    %549 = vmatprep.subr.mxu0 0.0
    %550 = vmatpush1.msra.mxu0 0.0
    %551 = vmatprep.subr.mxu0 0.0
    %552 = vmatpush1.msra.mxu0 0.0
    %553 = vmatprep.subr.mxu0 0.0
    %554 = vmatpush1.msra.mxu0 0.0
    %555 = vmatprep.subr.mxu0 0.0
    %556 = vmatpush1.msra.mxu0 0.0
    %557 = vmatprep.subr.mxu0 0.0
    %558 = vmatpush1.msra.mxu0 0.0
    %559 = vmatprep.subr.mxu0 0.0
    %560 = vmatpush1.msra.mxu0 0.0
    %561 = vmatprep.subr.mxu0 0.0
    %562 = vmatpush1.msra.mxu0 0.0
    %563 = vmatprep.subr.mxu0 0.0
    %564 = vmatpush1.msra.mxu0 0.0
    %565 = vmatprep.subr.mxu0 0.0
    %566 = vmatpush1.msra.mxu0 0.0
    %567 = vmatprep.subr.mxu0 0.0
    %568 = vmatpush1.msra.mxu0 0.0
    %569 = vmatprep.subr.mxu0 0.0
    %570 = vmatpush1.msra.mxu0 0.0
    %571 = vmatprep.subr.mxu0 0.0
    %572 = vmatpush1.msra.mxu0 0.0
    %573 = vmatprep.subr.mxu0 0.0
    %574 = vmatpush1.msra.mxu0 0.0
    %575 = vmatprep.subr.mxu0 0.0
    %576 = vmatpush1.msra.mxu0 0.0
    %577 = vmatprep.subr.mxu0 0.0
    %578 = vmatpush1.msra.mxu0 0.0
    %579 = vmatprep.subr.mxu0 0.0
    %580 = vmatpush1.msra.mxu0 0.0
    %581 = vmatprep.subr.mxu0 0.0
    %582 = vmatpush1.msra.mxu0 0.0
    %583 = vmatprep.subr.mxu0 0.0
    %584 = vmatpush1.msra.mxu0 0.0
    %585 = vmatprep.subr.mxu0 0.0
    %586 = vmatpush1.msra.mxu0 0.0
    %587 = vmatprep.subr.mxu0 0.0
    %588 = vmatpush1.msra.mxu0 0.0
    %589 = vmatprep.subr.mxu0 0.0
    %590 = vmatpush1.msra.mxu0 0.0
    %591 = vmatprep.subr.mxu0 0.0
    %592 = vmatpush1.msra.mxu0 0.0
    %593 = vmatprep.subr.mxu0 0.0
    %594 = vmatpush1.msra.mxu0 0.0
    %595 = vmatprep.subr.mxu0 0.0
    %596 = vmatpush1.msra.mxu0 0.0
    %597 = vmatprep.subr.mxu0 0.0
    %598 = vmatpush1.msra.mxu0 0.0
    %599 = vmatprep.subr.mxu0 0.0
    %600 = vmatpush1.msra.mxu0 0.0
    %601 = vmatprep.mubr.f32.mxu0 0.0
    %602 = vmatmul.mubr.f32.gmra.mrb[0].mxu0 %v45
    %v603 = vpop.f32.mrb[0].mxu0
    %v604 = vadd.f32 0.0, %v603
    %v605 = vpop.f32.mrb[0].mxu0
    %606 = vmatprep.mubr.f32.mxu0 0.0
    %607 = vmatmul.mubr.f32.gmra.mrb[0].mxu0 %v48
    %v608 = vpop.f32.mrb[0].mxu0
    %v609 = vadd.f32 0.0, %v608
    %v610 = vpop.f32.mrb[0].mxu0
    %611 = vdwg.mxu0
    %v612 = vld [vmem:[#allocation2 + $0x90] sm:$0xff]
    %v614 = vsel %vm270, %v415, 0
    %v617 = vsel %vm270, %v416, 0
    %v620 = vsel %vm270, %v417, 0
    %622 = vmatprep.subr.mxu0 0.0
    %623 = vmatpush1.msra.mxu0 %v612
    %624 = vmatprep.subr.mxu0 0.0
    %625 = vmatpush1.msra.mxu0 0.0
    %626 = vmatprep.subr.mxu0 0.0
    %627 = vmatpush1.msra.mxu0 0.0
    %628 = vmatprep.subr.mxu0 0.0
    %629 = vmatpush1.msra.mxu0 0.0
    %630 = vmatprep.subr.mxu0 0.0
    %631 = vmatpush1.msra.mxu0 0.0
    %632 = vmatprep.subr.mxu0 0.0
    %633 = vmatpush1.msra.mxu0 0.0
    %634 = vmatprep.subr.mxu0 0.0
    %635 = vmatpush1.msra.mxu0 0.0
    %636 = vmatprep.subr.mxu0 0.0
    %637 = vmatpush1.msra.mxu0 0.0
    %638 = vmatprep.subr.mxu0 0.0
    %639 = vmatpush1.msra.mxu0 0.0
    %640 = vmatprep.subr.mxu0 0.0
    %641 = vmatpush1.msra.mxu0 0.0
    %642 = vmatprep.subr.mxu0 0.0
    %643 = vmatpush1.msra.mxu0 0.0
    %644 = vmatprep.subr.mxu0 0.0
    %645 = vmatpush1.msra.mxu0 0.0
    %646 = vmatprep.subr.mxu0 0.0
    %647 = vmatpush1.msra.mxu0 0.0
    %648 = vmatprep.subr.mxu0 0.0
    %649 = vmatpush1.msra.mxu0 0.0
    %650 = vmatprep.subr.mxu0 0.0
    %651 = vmatpush1.msra.mxu0 0.0
    %652 = vmatprep.subr.mxu0 0.0
    %653 = vmatpush1.msra.mxu0 0.0
    %654 = vmatprep.subr.mxu0 0.0
    %655 = vmatpush1.msra.mxu0 0.0
    %656 = vmatprep.subr.mxu0 0.0
    %657 = vmatpush1.msra.mxu0 0.0
    %658 = vmatprep.subr.mxu0 0.0
    %659 = vmatpush1.msra.mxu0 0.0
    %660 = vmatprep.subr.mxu0 0.0
    %661 = vmatpush1.msra.mxu0 0.0
    %662 = vmatprep.subr.mxu0 0.0
    %663 = vmatpush1.msra.mxu0 0.0
    %664 = vmatprep.subr.mxu0 0.0
    %665 = vmatpush1.msra.mxu0 0.0
    %666 = vmatprep.subr.mxu0 0.0
    %667 = vmatpush1.msra.mxu0 0.0
    %668 = vmatprep.subr.mxu0 0.0
    %669 = vmatpush1.msra.mxu0 0.0
    %670 = vmatprep.subr.mxu0 0.0
    %671 = vmatpush1.msra.mxu0 0.0
    %672 = vmatprep.subr.mxu0 0.0
    %673 = vmatpush1.msra.mxu0 0.0
    %674 = vmatprep.subr.mxu0 0.0
    %675 = vmatpush1.msra.mxu0 0.0
    %676 = vmatprep.subr.mxu0 0.0
    %677 = vmatpush1.msra.mxu0 0.0
    %678 = vmatprep.subr.mxu0 0.0
    %679 = vmatpush1.msra.mxu0 0.0
    %680 = vmatprep.subr.mxu0 0.0
    %681 = vmatpush1.msra.mxu0 0.0
    %682 = vmatprep.subr.mxu0 0.0
    %683 = vmatpush1.msra.mxu0 0.0
    %684 = vmatprep.subr.mxu0 0.0
    %685 = vmatpush1.msra.mxu0 0.0
    %686 = vmatprep.mubr.f32.mxu0 0.0
    %687 = vmatmul.mubr.f32.gmra.mrb[0].mxu0 %v614
    %v688 = vpop.f32.mrb[0].mxu0
    %v689 = vadd.f32 0.0, %v688
    %v690 = vpop.f32.mrb[0].mxu0
    %691 = vmatprep.mubr.f32.mxu0 0.0
    %692 = vmatmul.mubr.f32.gmra.mrb[0].mxu0 %v617
    %v693 = vpop.f32.mrb[0].mxu0
    %v694 = vadd.f32 0.0, %v693
    %v695 = vpop.f32.mrb[0].mxu0
    %696 = vmatprep.mubr.f32.mxu0 0.0
    %697 = vmatmul.mubr.f32.gmra.mrb[0].mxu0 %v620
    %v698 = vpop.f32.mrb[0].mxu0
    %v699 = vadd.f32 0.0, %v698
    %v700 = vpop.f32.mrb[0].mxu0
    %701 = vdwg.mxu0
    %702 = vmatprep.subr.mxu0 0.0
    %703 = vmatpush1.msra.mxu0 %v689
    %704 = vmatprep.subr.mxu0 0.0
    %705 = vmatpush1.msra.mxu0 %v694
    %706 = vmatprep.subr.mxu0 0.0
    %707 = vmatpush1.msra.mxu0 %v699
    %708 = vmatprep.subr.mxu0 0.0
    %709 = vmatpush1.msra.mxu0 0.0
    %710 = vmatprep.subr.mxu0 0.0
    %711 = vmatpush1.msra.mxu0 0.0
    %712 = vmatprep.subr.mxu0 0.0
    %713 = vmatpush1.msra.mxu0 0.0
    %714 = vmatprep.subr.mxu0 0.0
    %715 = vmatpush1.msra.mxu0 0.0
    %716 = vmatprep.subr.mxu0 0.0
    %717 = vmatpush1.msra.mxu0 0.0
    %718 = vmatprep.subr.mxu0 0.0
    %719 = vmatpush1.msra.mxu0 0.0
    %720 = vmatprep.subr.mxu0 0.0
    %721 = vmatpush1.msra.mxu0 0.0
    %722 = vmatprep.subr.mxu0 0.0
    %723 = vmatpush1.msra.mxu0 0.0
    %724 = vmatprep.subr.mxu0 0.0
    %725 = vmatpush1.msra.mxu0 0.0
    %726 = vmatprep.subr.mxu0 0.0
    %727 = vmatpush1.msra.mxu0 0.0
    %728 = vmatprep.subr.mxu0 0.0
    %729 = vmatpush1.msra.mxu0 0.0
    %730 = vmatprep.subr.mxu0 0.0
    %731 = vmatpush1.msra.mxu0 0.0
    %732 = vmatprep.subr.mxu0 0.0
    %733 = vmatpush1.msra.mxu0 0.0
    %734 = vmatprep.subr.mxu0 0.0
    %735 = vmatpush1.msra.mxu0 0.0
    %736 = vmatprep.subr.mxu0 0.0
    %737 = vmatpush1.msra.mxu0 0.0
    %738 = vmatprep.subr.mxu0 0.0
    %739 = vmatpush1.msra.mxu0 0.0
    %740 = vmatprep.subr.mxu0 0.0
    %741 = vmatpush1.msra.mxu0 0.0
    %742 = vmatprep.subr.mxu0 0.0
    %743 = vmatpush1.msra.mxu0 0.0
    %744 = vmatprep.subr.mxu0 0.0
    %745 = vmatpush1.msra.mxu0 0.0
    %746 = vmatprep.subr.mxu0 0.0
    %747 = vmatpush1.msra.mxu0 0.0
    %748 = vmatprep.subr.mxu0 0.0
    %749 = vmatpush1.msra.mxu0 0.0
    %750 = vmatprep.subr.mxu0 0.0
    %751 = vmatpush1.msra.mxu0 0.0
    %752 = vmatprep.subr.mxu0 0.0
    %753 = vmatpush1.msra.mxu0 0.0
    %754 = vmatprep.subr.mxu0 0.0
    %755 = vmatpush1.msra.mxu0 0.0
    %756 = vmatprep.subr.mxu0 0.0
    %757 = vmatpush1.msra.mxu0 0.0
    %758 = vmatprep.subr.mxu0 0.0
    %759 = vmatpush1.msra.mxu0 0.0
    %760 = vmatprep.subr.mxu0 0.0
    %761 = vmatpush1.msra.mxu0 0.0
    %762 = vmatprep.subr.mxu0 0.0
    %763 = vmatpush1.msra.mxu0 0.0
    %764 = vmatprep.subr.mxu0 0.0
    %765 = vmatpush1.msra.mxu0 0.0
    %766 = vmatprep.mubr.f32.mxu0 0.0
    %767 = vmatmul.mubr.f32.gmra.mrb[0].mxu0 %v453
    %v768 = vpop.f32.mrb[0].mxu0
    %v769 = vadd.f32 0.0, %v768
    %v770 = vpop.f32.mrb[0].mxu0
    %771 = vmatprep.mubr.f32.mxu0 0.0
    %772 = vmatmul.mubr.f32.gmra.mrb[0].mxu0 %v456
    %v773 = vpop.f32.mrb[0].mxu0
    %v774 = vadd.f32 0.0, %v773
    %v775 = vpop.f32.mrb[0].mxu0
    %776 = vdwg.mxu0
    %v778 = vsel %vm43, %v525, 0
    %v781 = vsel %vm43, %v530, 0
    %783 = vmatprep.subr.mxu0 0.0
    %784 = vmatpush1.msra.mxu0 %v604
    %785 = vmatprep.subr.mxu0 0.0
    %786 = vmatpush1.msra.mxu0 %v609
    %787 = vmatprep.subr.mxu0 0.0
    %788 = vmatpush1.msra.mxu0 0.0
    %789 = vmatprep.subr.mxu0 0.0
    %790 = vmatpush1.msra.mxu0 0.0
    %791 = vmatprep.subr.mxu0 0.0
    %792 = vmatpush1.msra.mxu0 0.0
    %793 = vmatprep.subr.mxu0 0.0
    %794 = vmatpush1.msra.mxu0 0.0
    %795 = vmatprep.subr.mxu0 0.0
    %796 = vmatpush1.msra.mxu0 0.0
    %797 = vmatprep.subr.mxu0 0.0
    %798 = vmatpush1.msra.mxu0 0.0
    %799 = vmatprep.subr.mxu0 0.0
    %800 = vmatpush1.msra.mxu0 0.0
    %801 = vmatprep.subr.mxu0 0.0
    %802 = vmatpush1.msra.mxu0 0.0
    %803 = vmatprep.subr.mxu0 0.0
    %804 = vmatpush1.msra.mxu0 0.0
    %805 = vmatprep.subr.mxu0 0.0
    %806 = vmatpush1.msra.mxu0 0.0
    %807 = vmatprep.subr.mxu0 0.0
    %808 = vmatpush1.msra.mxu0 0.0
    %809 = vmatprep.subr.mxu0 0.0
    %810 = vmatpush1.msra.mxu0 0.0
    %811 = vmatprep.subr.mxu0 0.0
    %812 = vmatpush1.msra.mxu0 0.0
    %813 = vmatprep.subr.mxu0 0.0
    %814 = vmatpush1.msra.mxu0 0.0
    %815 = vmatprep.subr.mxu0 0.0
    %816 = vmatpush1.msra.mxu0 0.0
    %817 = vmatprep.subr.mxu0 0.0
    %818 = vmatpush1.msra.mxu0 0.0
    %819 = vmatprep.subr.mxu0 0.0
    %820 = vmatpush1.msra.mxu0 0.0
    %821 = vmatprep.subr.mxu0 0.0
    %822 = vmatpush1.msra.mxu0 0.0
    %823 = vmatprep.subr.mxu0 0.0
    %824 = vmatpush1.msra.mxu0 0.0
    %825 = vmatprep.subr.mxu0 0.0
    %826 = vmatpush1.msra.mxu0 0.0
    %827 = vmatprep.subr.mxu0 0.0
    %828 = vmatpush1.msra.mxu0 0.0
    %829 = vmatprep.subr.mxu0 0.0
    %830 = vmatpush1.msra.mxu0 0.0
    %831 = vmatprep.subr.mxu0 0.0
    %832 = vmatpush1.msra.mxu0 0.0
    %833 = vmatprep.subr.mxu0 0.0
    %834 = vmatpush1.msra.mxu0 0.0
    %835 = vmatprep.subr.mxu0 0.0
    %836 = vmatpush1.msra.mxu0 0.0
    %837 = vmatprep.subr.mxu0 0.0
    %838 = vmatpush1.msra.mxu0 0.0
    %839 = vmatprep.subr.mxu0 0.0
    %840 = vmatpush1.msra.mxu0 0.0
    %841 = vmatprep.subr.mxu0 0.0
    %842 = vmatpush1.msra.mxu0 0.0
    %843 = vmatprep.subr.mxu0 0.0
    %844 = vmatpush1.msra.mxu0 0.0
    %845 = vmatprep.subr.mxu0 0.0
    %846 = vmatpush1.msra.mxu0 0.0
    %847 = vmatprep.mubr.f32.mxu0 0.0
    %848 = vmatmul.mubr.f32.gmra.mrb[0].mxu0 %v778
    %v849 = vpop.f32.mrb[0].mxu0
    %v850 = vadd.f32 0.0, %v849
    %v851 = vpop.f32.mrb[0].mxu0
    %852 = vmatprep.mubr.f32.mxu0 0.0
    %853 = vmatmul.mubr.f32.gmra.mrb[0].mxu0 %v781
    %v854 = vpop.f32.mrb[0].mxu0
    %v855 = vadd.f32 0.0, %v854
    %v856 = vpop.f32.mrb[0].mxu0
    %857 = vdwg.mxu0
    %858 = vmatprep.subr.mxu0 0.0
    %859 = vmatpush1.msra.mxu0 %v533
    %860 = vmatprep.subr.mxu0 0.0
    %861 = vmatpush1.msra.mxu0 %v534
    %862 = vmatprep.subr.mxu0 0.0
    %863 = vmatpush1.msra.mxu0 0.0
    %864 = vmatprep.subr.mxu0 0.0
    %865 = vmatpush1.msra.mxu0 0.0
    %866 = vmatprep.subr.mxu0 0.0
    %867 = vmatpush1.msra.mxu0 0.0
    %868 = vmatprep.subr.mxu0 0.0
    %869 = vmatpush1.msra.mxu0 0.0
    %870 = vmatprep.subr.mxu0 0.0
    %871 = vmatpush1.msra.mxu0 0.0
    %872 = vmatprep.subr.mxu0 0.0
    %873 = vmatpush1.msra.mxu0 0.0
    %874 = vmatprep.subr.mxu0 0.0
    %875 = vmatpush1.msra.mxu0 0.0
    %876 = vmatprep.subr.mxu0 0.0
    %877 = vmatpush1.msra.mxu0 0.0
    %878 = vmatprep.subr.mxu0 0.0
    %879 = vmatpush1.msra.mxu0 0.0
    %880 = vmatprep.subr.mxu0 0.0
    %881 = vmatpush1.msra.mxu0 0.0
    %882 = vmatprep.subr.mxu0 0.0
    %883 = vmatpush1.msra.mxu0 0.0
    %884 = vmatprep.subr.mxu0 0.0
    %885 = vmatpush1.msra.mxu0 0.0
    %886 = vmatprep.subr.mxu0 0.0
    %887 = vmatpush1.msra.mxu0 0.0
    %888 = vmatprep.subr.mxu0 0.0
    %889 = vmatpush1.msra.mxu0 0.0
    %890 = vmatprep.subr.mxu0 0.0
    %891 = vmatpush1.msra.mxu0 0.0
    %892 = vmatprep.subr.mxu0 0.0
    %893 = vmatpush1.msra.mxu0 0.0
    %894 = vmatprep.subr.mxu0 0.0
    %895 = vmatpush1.msra.mxu0 0.0
    %896 = vmatprep.subr.mxu0 0.0
    %897 = vmatpush1.msra.mxu0 0.0
    %898 = vmatprep.subr.mxu0 0.0
    %899 = vmatpush1.msra.mxu0 0.0
    %900 = vmatprep.subr.mxu0 0.0
    %901 = vmatpush1.msra.mxu0 0.0
    %902 = vmatprep.subr.mxu0 0.0
    %903 = vmatpush1.msra.mxu0 0.0
    %904 = vmatprep.subr.mxu0 0.0
    %905 = vmatpush1.msra.mxu0 0.0
    %906 = vmatprep.subr.mxu0 0.0
    %907 = vmatpush1.msra.mxu0 0.0
    %908 = vmatprep.subr.mxu0 0.0
    %909 = vmatpush1.msra.mxu0 0.0
    %910 = vmatprep.subr.mxu0 0.0
    %911 = vmatpush1.msra.mxu0 0.0
    %912 = vmatprep.subr.mxu0 0.0
    %913 = vmatpush1.msra.mxu0 0.0
    %914 = vmatprep.subr.mxu0 0.0
    %915 = vmatpush1.msra.mxu0 0.0
    %916 = vmatprep.subr.mxu0 0.0
    %917 = vmatpush1.msra.mxu0 0.0
    %918 = vmatprep.subr.mxu0 0.0
    %919 = vmatpush1.msra.mxu0 0.0
    %920 = vmatprep.subr.mxu0 0.0
    %921 = vmatpush1.msra.mxu0 0.0
    %922 = vmatprep.mubr.f32.mxu0 0.0
    %923 = vmatmul.mubr.f32.gmra.mrb[0].mxu0 %v45
    %v924 = vpop.f32.mrb[0].mxu0
    %v925 = vadd.f32 %v850, %v924
    %v926 = vpop.f32.mrb[0].mxu0
    %927 = vmatprep.mubr.f32.mxu0 0.0
    %928 = vmatmul.mubr.f32.gmra.mrb[0].mxu0 %v48
    %v929 = vpop.f32.mrb[0].mxu0
    %v930 = vadd.f32 %v855, %v929
    %v931 = vpop.f32.mrb[0].mxu0
    %932 = vdwg.mxu0
    %v933 = vadd.f32 %v925, %v769
    %v934 = vadd.f32 %v930, %v774
    %v935 = vld [vmem:[#allocation2 + $0x98] sm:$0x1]
    %v936 = vlaneseq
    %v937 = vshrl.u32 %v936, 7
    %v938 = vsub.s32 0, %v937
    %v939 = vrot.slane %v935, %v938
    %v940 = vadd.f32 %v933, %v939
    %v941 = vadd.f32 %v934, %v939
    %v942 = vld [vmem:[%s3] sm:$0xff]
    %v943 = vld [vmem:[%s3 + $0x8] sm:$0x3]
    %vm944 = vcmask 80896
    %v946 = vsel %vm944, %v262, 0
    %v949 = vsel %vm944, %v263, 0
    %vm951 = vcmask 1041408
    %v953 = vsel %vm951, %v943, 0
    %955 = vmatprep.subr.mxu0 0.0
    %956 = vmatpush1.msra.mxu0 %v942
    %957 = vmatprep.subr.mxu0 0.0
    %958 = vmatpush1.msra.mxu0 %v953
    %959 = vmatprep.subr.mxu0 0.0
    %960 = vmatpush1.msra.mxu0 0.0
    %961 = vmatprep.subr.mxu0 0.0
    %962 = vmatpush1.msra.mxu0 0.0
    %963 = vmatprep.subr.mxu0 0.0
    %964 = vmatpush1.msra.mxu0 0.0
    %965 = vmatprep.subr.mxu0 0.0
    %966 = vmatpush1.msra.mxu0 0.0
    %967 = vmatprep.subr.mxu0 0.0
    %968 = vmatpush1.msra.mxu0 0.0
    %969 = vmatprep.subr.mxu0 0.0
    %970 = vmatpush1.msra.mxu0 0.0
    %971 = vmatprep.subr.mxu0 0.0
    %972 = vmatpush1.msra.mxu0 0.0
    %973 = vmatprep.subr.mxu0 0.0
    %974 = vmatpush1.msra.mxu0 0.0
    %975 = vmatprep.subr.mxu0 0.0
    %976 = vmatpush1.msra.mxu0 0.0
    %977 = vmatprep.subr.mxu0 0.0
    %978 = vmatpush1.msra.mxu0 0.0
    %979 = vmatprep.subr.mxu0 0.0
    %980 = vmatpush1.msra.mxu0 0.0
    %981 = vmatprep.subr.mxu0 0.0
    %982 = vmatpush1.msra.mxu0 0.0
    %983 = vmatprep.subr.mxu0 0.0
    %984 = vmatpush1.msra.mxu0 0.0
    %985 = vmatprep.subr.mxu0 0.0
    %986 = vmatpush1.msra.mxu0 0.0
    %987 = vmatprep.subr.mxu0 0.0
    %988 = vmatpush1.msra.mxu0 0.0
    %989 = vmatprep.subr.mxu0 0.0
    %990 = vmatpush1.msra.mxu0 0.0
    %991 = vmatprep.subr.mxu0 0.0
    %992 = vmatpush1.msra.mxu0 0.0
    %993 = vmatprep.subr.mxu0 0.0
    %994 = vmatpush1.msra.mxu0 0.0
    %995 = vmatprep.subr.mxu0 0.0
    %996 = vmatpush1.msra.mxu0 0.0
    %997 = vmatprep.subr.mxu0 0.0
    %998 = vmatpush1.msra.mxu0 0.0
    %999 = vmatprep.subr.mxu0 0.0
    %1000 = vmatpush1.msra.mxu0 0.0
    %1001 = vmatprep.subr.mxu0 0.0
    %1002 = vmatpush1.msra.mxu0 0.0
    %1003 = vmatprep.subr.mxu0 0.0
    %1004 = vmatpush1.msra.mxu0 0.0
    %1005 = vmatprep.subr.mxu0 0.0
    %1006 = vmatpush1.msra.mxu0 0.0
    %1007 = vmatprep.subr.mxu0 0.0
    %1008 = vmatpush1.msra.mxu0 0.0
    %1009 = vmatprep.subr.mxu0 0.0
    %1010 = vmatpush1.msra.mxu0 0.0
    %1011 = vmatprep.subr.mxu0 0.0
    %1012 = vmatpush1.msra.mxu0 0.0
    %1013 = vmatprep.subr.mxu0 0.0
    %1014 = vmatpush1.msra.mxu0 0.0
    %1015 = vmatprep.subr.mxu0 0.0
    %1016 = vmatpush1.msra.mxu0 0.0
    %1017 = vmatprep.subr.mxu0 0.0
    %1018 = vmatpush1.msra.mxu0 0.0
    %1019 = vmatprep.mubr.f32.mxu0 0.0
    %1020 = vmatmul.mubr.f32.gmra.mrb[0].mxu0 %v946
    %v1021 = vpop.f32.mrb[0].mxu0
    %v1022 = vadd.f32 0.0, %v1021
    %v1023 = vpop.f32.mrb[0].mxu0
    %1024 = vmatprep.mubr.f32.mxu0 0.0
    %1025 = vmatmul.mubr.f32.gmra.mrb[0].mxu0 %v949
    %v1026 = vpop.f32.mrb[0].mxu0
    %v1027 = vadd.f32 0.0, %v1026
    %v1028 = vpop.f32.mrb[0].mxu0
    %1029 = vdwg.mxu0
    %v1030 = vadd.f32 %v940, %v1022
    %v1031 = vadd.f32 %v941, %v1027
    %1034 = vrot.lane.b32.xlu0 %v1022, 118
    %v1035 = vpop.permute.xlu0 %1034
    %1036 = vrot.lane.b32.xlu0 %v1027, 118
    %v1037 = vpop.permute.xlu0 %1036
    %1040 = vmatprep.subr.mxu0 0.0
    %1041 = vmatpush1.msra.mxu0 %v1035
    %1042 = vmatprep.subr.mxu0 0.0
    %1043 = vmatpush1.msra.mxu0 %v1037
    %1044 = vmatprep.subr.mxu0 0.0
    %1045 = vmatpush1.msra.mxu0 0.0
    %1046 = vmatprep.subr.mxu0 0.0
    %1047 = vmatpush1.msra.mxu0 0.0
    %1048 = vmatprep.subr.mxu0 0.0
    %1049 = vmatpush1.msra.mxu0 0.0
    %1050 = vmatprep.subr.mxu0 0.0
    %1051 = vmatpush1.msra.mxu0 0.0
    %1052 = vmatprep.subr.mxu0 0.0
    %1053 = vmatpush1.msra.mxu0 0.0
    %1054 = vmatprep.subr.mxu0 0.0
    %1055 = vmatpush1.msra.mxu0 0.0
    %1056 = vmatprep.subr.mxu0 0.0
    %1057 = vmatpush1.msra.mxu0 0.0
    %1058 = vmatprep.subr.mxu0 0.0
    %1059 = vmatpush1.msra.mxu0 0.0
    %1060 = vmatprep.subr.mxu0 0.0
    %1061 = vmatpush1.msra.mxu0 0.0
    %1062 = vmatprep.subr.mxu0 0.0
    %1063 = vmatpush1.msra.mxu0 0.0
    %1064 = vmatprep.subr.mxu0 0.0
    %1065 = vmatpush1.msra.mxu0 0.0
    %1066 = vmatprep.subr.mxu0 0.0
    %1067 = vmatpush1.msra.mxu0 0.0
    %1068 = vmatprep.subr.mxu0 0.0
    %1069 = vmatpush1.msra.mxu0 0.0
    %1070 = vmatprep.subr.mxu0 0.0
    %1071 = vmatpush1.msra.mxu0 0.0
    %1072 = vmatprep.subr.mxu0 0.0
    %1073 = vmatpush1.msra.mxu0 0.0
    %1074 = vmatprep.subr.mxu0 0.0
    %1075 = vmatpush1.msra.mxu0 0.0
    %1076 = vmatprep.subr.mxu0 0.0
    %1077 = vmatpush1.msra.mxu0 0.0
    %1078 = vmatprep.subr.mxu0 0.0
    %1079 = vmatpush1.msra.mxu0 0.0
    %1080 = vmatprep.subr.mxu0 0.0
    %1081 = vmatpush1.msra.mxu0 0.0
    %1082 = vmatprep.subr.mxu0 0.0
    %1083 = vmatpush1.msra.mxu0 0.0
    %1084 = vmatprep.subr.mxu0 0.0
    %1085 = vmatpush1.msra.mxu0 0.0
    %1086 = vmatprep.subr.mxu0 0.0
    %1087 = vmatpush1.msra.mxu0 0.0
    %1088 = vmatprep.subr.mxu0 0.0
    %1089 = vmatpush1.msra.mxu0 0.0
    %1090 = vmatprep.subr.mxu0 0.0
    %1091 = vmatpush1.msra.mxu0 0.0
    %1092 = vmatprep.subr.mxu0 0.0
    %1093 = vmatpush1.msra.mxu0 0.0
    %1094 = vmatprep.subr.mxu0 0.0
    %1095 = vmatpush1.msra.mxu0 0.0
    %1096 = vmatprep.subr.mxu0 0.0
    %1097 = vmatpush1.msra.mxu0 0.0
    %1098 = vmatprep.subr.mxu0 0.0
    %1099 = vmatpush1.msra.mxu0 0.0
    %1100 = vmatprep.subr.mxu0 0.0
    %1101 = vmatpush1.msra.mxu0 0.0
    %1102 = vmatprep.subr.mxu0 0.0
    %1103 = vmatpush1.msra.mxu0 0.0
    %1104 = vmatprep.mubr.f32.mxu0 0.0
    %1105 = vmatmul.mubr.f32.gmra.mrb[0].mxu0 %v778
    %v1106 = vpop.f32.mrb[0].mxu0
    %v1107 = vadd.f32 0.0, %v1106
    %v1108 = vpop.f32.mrb[0].mxu0
    %1109 = vmatprep.mubr.f32.mxu0 0.0
    %1110 = vmatmul.mubr.f32.gmra.mrb[0].mxu0 %v781
    %v1111 = vpop.f32.mrb[0].mxu0
    %v1112 = vadd.f32 0.0, %v1111
    %v1113 = vpop.f32.mrb[0].mxu0
    %1114 = vdwg.mxu0
    %v1115 = vadd.f32 %v1030, %v1107
    %v1116 = vadd.f32 %v1031, %v1112
    %v1117 = vmax.f32 %v1115, 0.0
    %v1118 = vmax.f32 %v1116, 0.0
    %s1119 = scalar_lea.vmem %s3, 16
    %v1120 = vld [vmem:[%s1119] sm:$0xff]
    %v1121 = vld [vmem:[%s1119 + $0x8] sm:$0x3]
    %v1123 = vsel %vm944, %v1117, 0
    %v1126 = vsel %vm944, %v1118, 0
    %v1129 = vsel %vm951, %v1121, 0
    %1131 = vmatprep.subr.mxu0 0.0
    %1132 = vmatpush1.msra.mxu0 %v1120
    %1133 = vmatprep.subr.mxu0 0.0
    %1134 = vmatpush1.msra.mxu0 %v1129
    %1135 = vmatprep.subr.mxu0 0.0
    %1136 = vmatpush1.msra.mxu0 0.0
    %1137 = vmatprep.subr.mxu0 0.0
    %1138 = vmatpush1.msra.mxu0 0.0
    %1139 = vmatprep.subr.mxu0 0.0
    %1140 = vmatpush1.msra.mxu0 0.0
    %1141 = vmatprep.subr.mxu0 0.0
    %1142 = vmatpush1.msra.mxu0 0.0
    %1143 = vmatprep.subr.mxu0 0.0
    %1144 = vmatpush1.msra.mxu0 0.0
    %1145 = vmatprep.subr.mxu0 0.0
    %1146 = vmatpush1.msra.mxu0 0.0
    %1147 = vmatprep.subr.mxu0 0.0
    %1148 = vmatpush1.msra.mxu0 0.0
    %1149 = vmatprep.subr.mxu0 0.0
    %1150 = vmatpush1.msra.mxu0 0.0
    %1151 = vmatprep.subr.mxu0 0.0
    %1152 = vmatpush1.msra.mxu0 0.0
    %1153 = vmatprep.subr.mxu0 0.0
    %1154 = vmatpush1.msra.mxu0 0.0
    %1155 = vmatprep.subr.mxu0 0.0
    %1156 = vmatpush1.msra.mxu0 0.0
    %1157 = vmatprep.subr.mxu0 0.0
    %1158 = vmatpush1.msra.mxu0 0.0
    %1159 = vmatprep.subr.mxu0 0.0
    %1160 = vmatpush1.msra.mxu0 0.0
    %1161 = vmatprep.subr.mxu0 0.0
    %1162 = vmatpush1.msra.mxu0 0.0
    %1163 = vmatprep.subr.mxu0 0.0
    %1164 = vmatpush1.msra.mxu0 0.0
    %1165 = vmatprep.subr.mxu0 0.0
    %1166 = vmatpush1.msra.mxu0 0.0
    %1167 = vmatprep.subr.mxu0 0.0
    %1168 = vmatpush1.msra.mxu0 0.0
    %1169 = vmatprep.subr.mxu0 0.0
    %1170 = vmatpush1.msra.mxu0 0.0
    %1171 = vmatprep.subr.mxu0 0.0
    %1172 = vmatpush1.msra.mxu0 0.0
    %1173 = vmatprep.subr.mxu0 0.0
    %1174 = vmatpush1.msra.mxu0 0.0
    %1175 = vmatprep.subr.mxu0 0.0
    %1176 = vmatpush1.msra.mxu0 0.0
    %1177 = vmatprep.subr.mxu0 0.0
    %1178 = vmatpush1.msra.mxu0 0.0
    %1179 = vmatprep.subr.mxu0 0.0
    %1180 = vmatpush1.msra.mxu0 0.0
    %1181 = vmatprep.subr.mxu0 0.0
    %1182 = vmatpush1.msra.mxu0 0.0
    %1183 = vmatprep.subr.mxu0 0.0
    %1184 = vmatpush1.msra.mxu0 0.0
    %1185 = vmatprep.subr.mxu0 0.0
    %1186 = vmatpush1.msra.mxu0 0.0
    %1187 = vmatprep.subr.mxu0 0.0
    %1188 = vmatpush1.msra.mxu0 0.0
    %1189 = vmatprep.subr.mxu0 0.0
    %1190 = vmatpush1.msra.mxu0 0.0
    %1191 = vmatprep.subr.mxu0 0.0
    %1192 = vmatpush1.msra.mxu0 0.0
    %1193 = vmatprep.subr.mxu0 0.0
    %1194 = vmatpush1.msra.mxu0 0.0
    %1195 = vmatprep.mubr.f32.mxu0 0.0
    %1196 = vmatmul.mubr.f32.gmra.mrb[0].mxu0 %v1123
    %v1197 = vpop.f32.mrb[0].mxu0
    %v1198 = vadd.f32 0.0, %v1197
    %v1199 = vpop.f32.mrb[0].mxu0
    %1200 = vmatprep.mubr.f32.mxu0 0.0
    %1201 = vmatmul.mubr.f32.gmra.mrb[0].mxu0 %v1126
    %v1202 = vpop.f32.mrb[0].mxu0
    %v1203 = vadd.f32 0.0, %v1202
    %v1204 = vpop.f32.mrb[0].mxu0
    %1205 = vdwg.mxu0
    %1208 = vrot.lane.b32.xlu0 %v1198, 10
    %v1209 = vpop.permute.xlu0 %1208
    %1210 = vrot.lane.b32.xlu0 %v1203, 10
    %v1211 = vpop.permute.xlu0 %1210
    %v1214 = vadd.f32 %v940, %v1209
    %v1215 = vadd.f32 %v941, %v1211
    %1216 = vrot.lane.b32.xlu0 %v1198, 118
    %v1217 = vpop.permute.xlu0 %1216
    %1218 = vrot.lane.b32.xlu0 %v1203, 118
    %v1219 = vpop.permute.xlu0 %1218
    %1222 = vmatprep.subr.mxu0 0.0
    %1223 = vmatpush1.msra.mxu0 %v1217
    %1224 = vmatprep.subr.mxu0 0.0
    %1225 = vmatpush1.msra.mxu0 %v1219
    %1226 = vmatprep.subr.mxu0 0.0
    %1227 = vmatpush1.msra.mxu0 0.0
    %1228 = vmatprep.subr.mxu0 0.0
    %1229 = vmatpush1.msra.mxu0 0.0
    %1230 = vmatprep.subr.mxu0 0.0
    %1231 = vmatpush1.msra.mxu0 0.0
    %1232 = vmatprep.subr.mxu0 0.0
    %1233 = vmatpush1.msra.mxu0 0.0
    %1234 = vmatprep.subr.mxu0 0.0
    %1235 = vmatpush1.msra.mxu0 0.0
    %1236 = vmatprep.subr.mxu0 0.0
    %1237 = vmatpush1.msra.mxu0 0.0
    %1238 = vmatprep.subr.mxu0 0.0
    %1239 = vmatpush1.msra.mxu0 0.0
    %1240 = vmatprep.subr.mxu0 0.0
    %1241 = vmatpush1.msra.mxu0 0.0
    %1242 = vmatprep.subr.mxu0 0.0
    %1243 = vmatpush1.msra.mxu0 0.0
    %1244 = vmatprep.subr.mxu0 0.0
    %1245 = vmatpush1.msra.mxu0 0.0
    %1246 = vmatprep.subr.mxu0 0.0
    %1247 = vmatpush1.msra.mxu0 0.0
    %1248 = vmatprep.subr.mxu0 0.0
    %1249 = vmatpush1.msra.mxu0 0.0
    %1250 = vmatprep.subr.mxu0 0.0
    %1251 = vmatpush1.msra.mxu0 0.0
    %1252 = vmatprep.subr.mxu0 0.0
    %1253 = vmatpush1.msra.mxu0 0.0
    %1254 = vmatprep.subr.mxu0 0.0
    %1255 = vmatpush1.msra.mxu0 0.0
    %1256 = vmatprep.subr.mxu0 0.0
    %1257 = vmatpush1.msra.mxu0 0.0
    %1258 = vmatprep.subr.mxu0 0.0
    %1259 = vmatpush1.msra.mxu0 0.0
    %1260 = vmatprep.subr.mxu0 0.0
    %1261 = vmatpush1.msra.mxu0 0.0
    %1262 = vmatprep.subr.mxu0 0.0
    %1263 = vmatpush1.msra.mxu0 0.0
    %1264 = vmatprep.subr.mxu0 0.0
    %1265 = vmatpush1.msra.mxu0 0.0
    %1266 = vmatprep.subr.mxu0 0.0
    %1267 = vmatpush1.msra.mxu0 0.0
    %1268 = vmatprep.subr.mxu0 0.0
    %1269 = vmatpush1.msra.mxu0 0.0
    %1270 = vmatprep.subr.mxu0 0.0
    %1271 = vmatpush1.msra.mxu0 0.0
    %1272 = vmatprep.subr.mxu0 0.0
    %1273 = vmatpush1.msra.mxu0 0.0
    %1274 = vmatprep.subr.mxu0 0.0
    %1275 = vmatpush1.msra.mxu0 0.0
    %1276 = vmatprep.subr.mxu0 0.0
    %1277 = vmatpush1.msra.mxu0 0.0
    %1278 = vmatprep.subr.mxu0 0.0
    %1279 = vmatpush1.msra.mxu0 0.0
    %1280 = vmatprep.subr.mxu0 0.0
    %1281 = vmatpush1.msra.mxu0 0.0
    %1282 = vmatprep.subr.mxu0 0.0
    %1283 = vmatpush1.msra.mxu0 0.0
    %1284 = vmatprep.subr.mxu0 0.0
    %1285 = vmatpush1.msra.mxu0 0.0
    %1286 = vmatprep.mubr.f32.mxu0 0.0
    %1287 = vmatmul.mubr.f32.gmra.mrb[0].mxu0 %v778
    %v1288 = vpop.f32.mrb[0].mxu0
    %v1289 = vadd.f32 0.0, %v1288
    %v1290 = vpop.f32.mrb[0].mxu0
    %1291 = vmatprep.mubr.f32.mxu0 0.0
    %1292 = vmatmul.mubr.f32.gmra.mrb[0].mxu0 %v781
    %v1293 = vpop.f32.mrb[0].mxu0
    %v1294 = vadd.f32 0.0, %v1293
    %v1295 = vpop.f32.mrb[0].mxu0
    %1296 = vdwg.mxu0
    %1299 = vrot.lane.b32.xlu0 %v1289, 10
    %v1300 = vpop.permute.xlu0 %1299
    %1301 = vrot.lane.b32.xlu0 %v1294, 10
    %v1302 = vpop.permute.xlu0 %1301
    %v1305 = vadd.f32 %v1214, %v1300
    %v1306 = vadd.f32 %v1215, %v1302
    %v1307 = vmax.f32 %v1305, 0.0
    %v1308 = vmax.f32 %v1306, 0.0
    %s1309 = scalar_lea.vmem %s3, 32
    %v1310 = vld [vmem:[%s1309] sm:$0xff]
    %v1311 = vld [vmem:[%s1309 + $0x8] sm:$0x3]
    %1314 = vrot.lane.b32.xlu0 %v1307, 118
    %v1315 = vpop.permute.xlu0 %1314
    %1316 = vrot.lane.b32.xlu0 %v1308, 118
    %v1317 = vpop.permute.xlu0 %1316
    %v1318 = vsel %vm944, %v1315, 0
    %v1320 = vsel %vm944, %v1317, 0
    %v1323 = vsel %vm951, %v1311, 0
    %1325 = vmatprep.subr.mxu0 0.0
    %1326 = vmatpush1.msra.mxu0 %v1310
    %1327 = vmatprep.subr.mxu0 0.0
    %1328 = vmatpush1.msra.mxu0 %v1323
    %1329 = vmatprep.subr.mxu0 0.0
    %1330 = vmatpush1.msra.mxu0 0.0
    %1331 = vmatprep.subr.mxu0 0.0
    %1332 = vmatpush1.msra.mxu0 0.0
    %1333 = vmatprep.subr.mxu0 0.0
    %1334 = vmatpush1.msra.mxu0 0.0
    %1335 = vmatprep.subr.mxu0 0.0
    %1336 = vmatpush1.msra.mxu0 0.0
    %1337 = vmatprep.subr.mxu0 0.0
    %1338 = vmatpush1.msra.mxu0 0.0
    %1339 = vmatprep.subr.mxu0 0.0
    %1340 = vmatpush1.msra.mxu0 0.0
    %1341 = vmatprep.subr.mxu0 0.0
    %1342 = vmatpush1.msra.mxu0 0.0
    %1343 = vmatprep.subr.mxu0 0.0
    %1344 = vmatpush1.msra.mxu0 0.0
    %1345 = vmatprep.subr.mxu0 0.0
    %1346 = vmatpush1.msra.mxu0 0.0
    %1347 = vmatprep.subr.mxu0 0.0
    %1348 = vmatpush1.msra.mxu0 0.0
    %1349 = vmatprep.subr.mxu0 0.0
    %1350 = vmatpush1.msra.mxu0 0.0
    %1351 = vmatprep.subr.mxu0 0.0
    %1352 = vmatpush1.msra.mxu0 0.0
    %1353 = vmatprep.subr.mxu0 0.0
    %1354 = vmatpush1.msra.mxu0 0.0
    %1355 = vmatprep.subr.mxu0 0.0
    %1356 = vmatpush1.msra.mxu0 0.0
    %1357 = vmatprep.subr.mxu0 0.0
    %1358 = vmatpush1.msra.mxu0 0.0
    %1359 = vmatprep.subr.mxu0 0.0
    %1360 = vmatpush1.msra.mxu0 0.0
    %1361 = vmatprep.subr.mxu0 0.0
    %1362 = vmatpush1.msra.mxu0 0.0
    %1363 = vmatprep.subr.mxu0 0.0
    %1364 = vmatpush1.msra.mxu0 0.0
    %1365 = vmatprep.subr.mxu0 0.0
    %1366 = vmatpush1.msra.mxu0 0.0
    %1367 = vmatprep.subr.mxu0 0.0
    %1368 = vmatpush1.msra.mxu0 0.0
    %1369 = vmatprep.subr.mxu0 0.0
    %1370 = vmatpush1.msra.mxu0 0.0
    %1371 = vmatprep.subr.mxu0 0.0
    %1372 = vmatpush1.msra.mxu0 0.0
    %1373 = vmatprep.subr.mxu0 0.0
    %1374 = vmatpush1.msra.mxu0 0.0
    %1375 = vmatprep.subr.mxu0 0.0
    %1376 = vmatpush1.msra.mxu0 0.0
    %1377 = vmatprep.subr.mxu0 0.0
    %1378 = vmatpush1.msra.mxu0 0.0
    %1379 = vmatprep.subr.mxu0 0.0
    %1380 = vmatpush1.msra.mxu0 0.0
    %1381 = vmatprep.subr.mxu0 0.0
    %1382 = vmatpush1.msra.mxu0 0.0
    %1383 = vmatprep.subr.mxu0 0.0
    %1384 = vmatpush1.msra.mxu0 0.0
    %1385 = vmatprep.subr.mxu0 0.0
    %1386 = vmatpush1.msra.mxu0 0.0
    %1387 = vmatprep.subr.mxu0 0.0
    %1388 = vmatpush1.msra.mxu0 0.0
    %1389 = vmatprep.mubr.f32.mxu0 0.0
    %1390 = vmatmul.mubr.f32.gmra.mrb[0].mxu0 %v1318
    %v1391 = vpop.f32.mrb[0].mxu0
    %v1392 = vadd.f32 0.0, %v1391
    %v1393 = vpop.f32.mrb[0].mxu0
    %1394 = vmatprep.mubr.f32.mxu0 0.0
    %1395 = vmatmul.mubr.f32.gmra.mrb[0].mxu0 %v1320
    %v1396 = vpop.f32.mrb[0].mxu0
    %v1397 = vadd.f32 0.0, %v1396
    %v1398 = vpop.f32.mrb[0].mxu0
    %1399 = vdwg.mxu0
    %1402 = vrot.lane.b32.xlu0 %v1392, 20
    %v1403 = vpop.permute.xlu0 %1402
    %1404 = vrot.lane.b32.xlu0 %v1397, 20
    %v1405 = vpop.permute.xlu0 %1404
    %v1408 = vadd.f32 %v940, %v1403
    %v1409 = vadd.f32 %v941, %v1405
    %1410 = vrot.lane.b32.xlu0 %v1392, 118
    %v1411 = vpop.permute.xlu0 %1410
    %1412 = vrot.lane.b32.xlu0 %v1397, 118
    %v1413 = vpop.permute.xlu0 %1412
    %1416 = vmatprep.subr.mxu0 0.0
    %1417 = vmatpush1.msra.mxu0 %v1411
    %1418 = vmatprep.subr.mxu0 0.0
    %1419 = vmatpush1.msra.mxu0 %v1413
    %1420 = vmatprep.subr.mxu0 0.0
    %1421 = vmatpush1.msra.mxu0 0.0
    %1422 = vmatprep.subr.mxu0 0.0
    %1423 = vmatpush1.msra.mxu0 0.0
    %1424 = vmatprep.subr.mxu0 0.0
    %1425 = vmatpush1.msra.mxu0 0.0
    %1426 = vmatprep.subr.mxu0 0.0
    %1427 = vmatpush1.msra.mxu0 0.0
    %1428 = vmatprep.subr.mxu0 0.0
    %1429 = vmatpush1.msra.mxu0 0.0
    %1430 = vmatprep.subr.mxu0 0.0
    %1431 = vmatpush1.msra.mxu0 0.0
    %1432 = vmatprep.subr.mxu0 0.0
    %1433 = vmatpush1.msra.mxu0 0.0
    %1434 = vmatprep.subr.mxu0 0.0
    %1435 = vmatpush1.msra.mxu0 0.0
    %1436 = vmatprep.subr.mxu0 0.0
    %1437 = vmatpush1.msra.mxu0 0.0
    %1438 = vmatprep.subr.mxu0 0.0
    %1439 = vmatpush1.msra.mxu0 0.0
    %1440 = vmatprep.subr.mxu0 0.0
    %1441 = vmatpush1.msra.mxu0 0.0
    %1442 = vmatprep.subr.mxu0 0.0
    %1443 = vmatpush1.msra.mxu0 0.0
    %1444 = vmatprep.subr.mxu0 0.0
    %1445 = vmatpush1.msra.mxu0 0.0
    %1446 = vmatprep.subr.mxu0 0.0
    %1447 = vmatpush1.msra.mxu0 0.0
    %1448 = vmatprep.subr.mxu0 0.0
    %1449 = vmatpush1.msra.mxu0 0.0
    %1450 = vmatprep.subr.mxu0 0.0
    %1451 = vmatpush1.msra.mxu0 0.0
    %1452 = vmatprep.subr.mxu0 0.0
    %1453 = vmatpush1.msra.mxu0 0.0
    %1454 = vmatprep.subr.mxu0 0.0
    %1455 = vmatpush1.msra.mxu0 0.0
    %1456 = vmatprep.subr.mxu0 0.0
    %1457 = vmatpush1.msra.mxu0 0.0
    %1458 = vmatprep.subr.mxu0 0.0
    %1459 = vmatpush1.msra.mxu0 0.0
    %1460 = vmatprep.subr.mxu0 0.0
    %1461 = vmatpush1.msra.mxu0 0.0
    %1462 = vmatprep.subr.mxu0 0.0
    %1463 = vmatpush1.msra.mxu0 0.0
    %1464 = vmatprep.subr.mxu0 0.0
    %1465 = vmatpush1.msra.mxu0 0.0
    %1466 = vmatprep.subr.mxu0 0.0
    %1467 = vmatpush1.msra.mxu0 0.0
    %1468 = vmatprep.subr.mxu0 0.0
    %1469 = vmatpush1.msra.mxu0 0.0
    %1470 = vmatprep.subr.mxu0 0.0
    %1471 = vmatpush1.msra.mxu0 0.0
    %1472 = vmatprep.subr.mxu0 0.0
    %1473 = vmatpush1.msra.mxu0 0.0
    %1474 = vmatprep.subr.mxu0 0.0
    %1475 = vmatpush1.msra.mxu0 0.0
    %1476 = vmatprep.subr.mxu0 0.0
    %1477 = vmatpush1.msra.mxu0 0.0
    %1478 = vmatprep.subr.mxu0 0.0
    %1479 = vmatpush1.msra.mxu0 0.0
    %1480 = vmatprep.mubr.f32.mxu0 0.0
    %1481 = vmatmul.mubr.f32.gmra.mrb[0].mxu0 %v778
    %v1482 = vpop.f32.mrb[0].mxu0
    %v1483 = vadd.f32 0.0, %v1482
    %v1484 = vpop.f32.mrb[0].mxu0
    %1485 = vmatprep.mubr.f32.mxu0 0.0
    %1486 = vmatmul.mubr.f32.gmra.mrb[0].mxu0 %v781
    %v1487 = vpop.f32.mrb[0].mxu0
    %v1488 = vadd.f32 0.0, %v1487
    %v1489 = vpop.f32.mrb[0].mxu0
    %1490 = vdwg.mxu0
    %1493 = vrot.lane.b32.xlu0 %v1483, 20
    %v1494 = vpop.permute.xlu0 %1493
    %1495 = vrot.lane.b32.xlu0 %v1488, 20
    %v1496 = vpop.permute.xlu0 %1495
    %v1499 = vadd.f32 %v1408, %v1494
    %v1500 = vadd.f32 %v1409, %v1496
    %v1501 = vmax.f32 %v1499, 0.0
    %v1502 = vmax.f32 %v1500, 0.0
    %s1503 = scalar_lea.vmem %s3, 48
    %v1504 = vld [vmem:[%s1503] sm:$0xff]
    %v1505 = vld [vmem:[%s1503 + $0x8] sm:$0x3]
    %1508 = vrot.lane.b32.xlu0 %v1501, 108
    %v1509 = vpop.permute.xlu0 %1508
    %1510 = vrot.lane.b32.xlu0 %v1502, 108
    %v1511 = vpop.permute.xlu0 %1510
    %v1512 = vsel %vm944, %v1509, 0
    %v1514 = vsel %vm944, %v1511, 0
    %v1517 = vsel %vm951, %v1505, 0
    %1519 = vmatprep.subr.mxu0 0.0
    %1520 = vmatpush1.msra.mxu0 %v1504
    %1521 = vmatprep.subr.mxu0 0.0
    %1522 = vmatpush1.msra.mxu0 %v1517
    %1523 = vmatprep.subr.mxu0 0.0
    %1524 = vmatpush1.msra.mxu0 0.0
    %1525 = vmatprep.subr.mxu0 0.0
    %1526 = vmatpush1.msra.mxu0 0.0
    %1527 = vmatprep.subr.mxu0 0.0
    %1528 = vmatpush1.msra.mxu0 0.0
    %1529 = vmatprep.subr.mxu0 0.0
    %1530 = vmatpush1.msra.mxu0 0.0
    %1531 = vmatprep.subr.mxu0 0.0
    %1532 = vmatpush1.msra.mxu0 0.0
    %1533 = vmatprep.subr.mxu0 0.0
    %1534 = vmatpush1.msra.mxu0 0.0
    %1535 = vmatprep.subr.mxu0 0.0
    %1536 = vmatpush1.msra.mxu0 0.0
    %1537 = vmatprep.subr.mxu0 0.0
    %1538 = vmatpush1.msra.mxu0 0.0
    %1539 = vmatprep.subr.mxu0 0.0
    %1540 = vmatpush1.msra.mxu0 0.0
    %1541 = vmatprep.subr.mxu0 0.0
    %1542 = vmatpush1.msra.mxu0 0.0
    %1543 = vmatprep.subr.mxu0 0.0
    %1544 = vmatpush1.msra.mxu0 0.0
    %1545 = vmatprep.subr.mxu0 0.0
    %1546 = vmatpush1.msra.mxu0 0.0
    %1547 = vmatprep.subr.mxu0 0.0
    %1548 = vmatpush1.msra.mxu0 0.0
    %1549 = vmatprep.subr.mxu0 0.0
    %1550 = vmatpush1.msra.mxu0 0.0
    %1551 = vmatprep.subr.mxu0 0.0
    %1552 = vmatpush1.msra.mxu0 0.0
    %1553 = vmatprep.subr.mxu0 0.0
    %1554 = vmatpush1.msra.mxu0 0.0
    %1555 = vmatprep.subr.mxu0 0.0
    %1556 = vmatpush1.msra.mxu0 0.0
    %1557 = vmatprep.subr.mxu0 0.0
    %1558 = vmatpush1.msra.mxu0 0.0
    %1559 = vmatprep.subr.mxu0 0.0
    %1560 = vmatpush1.msra.mxu0 0.0
    %1561 = vmatprep.subr.mxu0 0.0
    %1562 = vmatpush1.msra.mxu0 0.0
    %1563 = vmatprep.subr.mxu0 0.0
    %1564 = vmatpush1.msra.mxu0 0.0
    %1565 = vmatprep.subr.mxu0 0.0
    %1566 = vmatpush1.msra.mxu0 0.0
    %1567 = vmatprep.subr.mxu0 0.0
    %1568 = vmatpush1.msra.mxu0 0.0
    %1569 = vmatprep.subr.mxu0 0.0
    %1570 = vmatpush1.msra.mxu0 0.0
    %1571 = vmatprep.subr.mxu0 0.0
    %1572 = vmatpush1.msra.mxu0 0.0
    %1573 = vmatprep.subr.mxu0 0.0
    %1574 = vmatpush1.msra.mxu0 0.0
    %1575 = vmatprep.subr.mxu0 0.0
    %1576 = vmatpush1.msra.mxu0 0.0
    %1577 = vmatprep.subr.mxu0 0.0
    %1578 = vmatpush1.msra.mxu0 0.0
    %1579 = vmatprep.subr.mxu0 0.0
    %1580 = vmatpush1.msra.mxu0 0.0
    %1581 = vmatprep.subr.mxu0 0.0
    %1582 = vmatpush1.msra.mxu0 0.0
    %1583 = vmatprep.mubr.f32.mxu0 0.0
    %1584 = vmatmul.mubr.f32.gmra.mrb[0].mxu0 %v1512
    %v1585 = vpop.f32.mrb[0].mxu0
    %v1586 = vadd.f32 0.0, %v1585
    %v1587 = vpop.f32.mrb[0].mxu0
    %1588 = vmatprep.mubr.f32.mxu0 0.0
    %1589 = vmatmul.mubr.f32.gmra.mrb[0].mxu0 %v1514
    %v1590 = vpop.f32.mrb[0].mxu0
    %v1591 = vadd.f32 0.0, %v1590
    %v1592 = vpop.f32.mrb[0].mxu0
    %1593 = vdwg.mxu0
    %1596 = vrot.lane.b32.xlu0 %v1586, 30
    %v1597 = vpop.permute.xlu0 %1596
    %1598 = vrot.lane.b32.xlu0 %v1591, 30
    %v1599 = vpop.permute.xlu0 %1598
    %v1602 = vadd.f32 %v940, %v1597
    %v1603 = vadd.f32 %v941, %v1599
    %1604 = vrot.lane.b32.xlu0 %v1586, 118
    %v1605 = vpop.permute.xlu0 %1604
    %1606 = vrot.lane.b32.xlu0 %v1591, 118
    %v1607 = vpop.permute.xlu0 %1606
    %1610 = vmatprep.subr.mxu0 0.0
    %1611 = vmatpush1.msra.mxu0 %v1605
    %1612 = vmatprep.subr.mxu0 0.0
    %1613 = vmatpush1.msra.mxu0 %v1607
    %1614 = vmatprep.subr.mxu0 0.0
    %1615 = vmatpush1.msra.mxu0 0.0
    %1616 = vmatprep.subr.mxu0 0.0
    %1617 = vmatpush1.msra.mxu0 0.0
    %1618 = vmatprep.subr.mxu0 0.0
    %1619 = vmatpush1.msra.mxu0 0.0
    %1620 = vmatprep.subr.mxu0 0.0
    %1621 = vmatpush1.msra.mxu0 0.0
    %1622 = vmatprep.subr.mxu0 0.0
    %1623 = vmatpush1.msra.mxu0 0.0
    %1624 = vmatprep.subr.mxu0 0.0
    %1625 = vmatpush1.msra.mxu0 0.0
    %1626 = vmatprep.subr.mxu0 0.0
    %1627 = vmatpush1.msra.mxu0 0.0
    %1628 = vmatprep.subr.mxu0 0.0
    %1629 = vmatpush1.msra.mxu0 0.0
    %1630 = vmatprep.subr.mxu0 0.0
    %1631 = vmatpush1.msra.mxu0 0.0
    %1632 = vmatprep.subr.mxu0 0.0
    %1633 = vmatpush1.msra.mxu0 0.0
    %1634 = vmatprep.subr.mxu0 0.0
    %1635 = vmatpush1.msra.mxu0 0.0
    %1636 = vmatprep.subr.mxu0 0.0
    %1637 = vmatpush1.msra.mxu0 0.0
    %1638 = vmatprep.subr.mxu0 0.0
    %1639 = vmatpush1.msra.mxu0 0.0
    %1640 = vmatprep.subr.mxu0 0.0
    %1641 = vmatpush1.msra.mxu0 0.0
    %1642 = vmatprep.subr.mxu0 0.0
    %1643 = vmatpush1.msra.mxu0 0.0
    %1644 = vmatprep.subr.mxu0 0.0
    %1645 = vmatpush1.msra.mxu0 0.0
    %1646 = vmatprep.subr.mxu0 0.0
    %1647 = vmatpush1.msra.mxu0 0.0
    %1648 = vmatprep.subr.mxu0 0.0
    %1649 = vmatpush1.msra.mxu0 0.0
    %1650 = vmatprep.subr.mxu0 0.0
    %1651 = vmatpush1.msra.mxu0 0.0
    %1652 = vmatprep.subr.mxu0 0.0
    %1653 = vmatpush1.msra.mxu0 0.0
    %1654 = vmatprep.subr.mxu0 0.0
    %1655 = vmatpush1.msra.mxu0 0.0
    %1656 = vmatprep.subr.mxu0 0.0
    %1657 = vmatpush1.msra.mxu0 0.0
    %1658 = vmatprep.subr.mxu0 0.0
    %1659 = vmatpush1.msra.mxu0 0.0
    %1660 = vmatprep.subr.mxu0 0.0
    %1661 = vmatpush1.msra.mxu0 0.0
    %1662 = vmatprep.subr.mxu0 0.0
    %1663 = vmatpush1.msra.mxu0 0.0
    %1664 = vmatprep.subr.mxu0 0.0
    %1665 = vmatpush1.msra.mxu0 0.0
    %1666 = vmatprep.subr.mxu0 0.0
    %1667 = vmatpush1.msra.mxu0 0.0
    %1668 = vmatprep.subr.mxu0 0.0
    %1669 = vmatpush1.msra.mxu0 0.0
    %1670 = vmatprep.subr.mxu0 0.0
    %1671 = vmatpush1.msra.mxu0 0.0
    %1672 = vmatprep.subr.mxu0 0.0
    %1673 = vmatpush1.msra.mxu0 0.0
    %1674 = vmatprep.mubr.f32.mxu0 0.0
    %1675 = vmatmul.mubr.f32.gmra.mrb[0].mxu0 %v778
    %v1676 = vpop.f32.mrb[0].mxu0
    %v1677 = vadd.f32 0.0, %v1676
    %v1678 = vpop.f32.mrb[0].mxu0
    %1679 = vmatprep.mubr.f32.mxu0 0.0
    %1680 = vmatmul.mubr.f32.gmra.mrb[0].mxu0 %v781
    %v1681 = vpop.f32.mrb[0].mxu0
    %v1682 = vadd.f32 0.0, %v1681
    %v1683 = vpop.f32.mrb[0].mxu0
    %1684 = vdwg.mxu0
    %1687 = vrot.lane.b32.xlu0 %v1677, 30
    %v1688 = vpop.permute.xlu0 %1687
    %1689 = vrot.lane.b32.xlu0 %v1682, 30
    %v1690 = vpop.permute.xlu0 %1689
    %v1693 = vadd.f32 %v1602, %v1688
    %v1694 = vadd.f32 %v1603, %v1690
    %v1695 = vmax.f32 %v1693, 0.0
    %v1696 = vmax.f32 %v1694, 0.0
    %v1697 = vld [vmem:[#allocation2 + $0xa0] sm:$0xff]
    %v1698 = vld [vmem:[#allocation2 + $0xa8] sm:$0x3]
    %v1699 = vld [vmem:[#allocation2 + $0xb0] sm:$0x1]
    %v1700 = vlaneseq
    %v1701 = vshrl.u32 %v1700, 7
    %v1702 = vsub.s32 0, %v1701
    %v1703 = vrot.slane %v1699, %v1702
    %1706 = vrot.lane.b32.xlu0 %v1695, 98
    %v1707 = vpop.permute.xlu0 %1706
    %1708 = vrot.lane.b32.xlu0 %v1696, 98
    %v1709 = vpop.permute.xlu0 %1708
    %v1710 = vsel %vm944, %v1707, 0
    %v1712 = vsel %vm944, %v1709, 0
    %v1715 = vsel %vm951, %v1698, 0
    %1717 = vmatprep.subr.mxu0 0.0
    %1718 = vmatpush1.msra.mxu0 %v1697
    %1719 = vmatprep.subr.mxu0 0.0
    %1720 = vmatpush1.msra.mxu0 %v1715
    %1721 = vmatprep.subr.mxu0 0.0
    %1722 = vmatpush1.msra.mxu0 0.0
    %1723 = vmatprep.subr.mxu0 0.0
    %1724 = vmatpush1.msra.mxu0 0.0
    %1725 = vmatprep.subr.mxu0 0.0
    %1726 = vmatpush1.msra.mxu0 0.0
    %1727 = vmatprep.subr.mxu0 0.0
    %1728 = vmatpush1.msra.mxu0 0.0
    %1729 = vmatprep.subr.mxu0 0.0
    %1730 = vmatpush1.msra.mxu0 0.0
    %1731 = vmatprep.subr.mxu0 0.0
    %1732 = vmatpush1.msra.mxu0 0.0
    %1733 = vmatprep.subr.mxu0 0.0
    %1734 = vmatpush1.msra.mxu0 0.0
    %1735 = vmatprep.subr.mxu0 0.0
    %1736 = vmatpush1.msra.mxu0 0.0
    %1737 = vmatprep.subr.mxu0 0.0
    %1738 = vmatpush1.msra.mxu0 0.0
    %1739 = vmatprep.subr.mxu0 0.0
    %1740 = vmatpush1.msra.mxu0 0.0
    %1741 = vmatprep.subr.mxu0 0.0
    %1742 = vmatpush1.msra.mxu0 0.0
    %1743 = vmatprep.subr.mxu0 0.0
    %1744 = vmatpush1.msra.mxu0 0.0
    %1745 = vmatprep.subr.mxu0 0.0
    %1746 = vmatpush1.msra.mxu0 0.0
    %1747 = vmatprep.subr.mxu0 0.0
    %1748 = vmatpush1.msra.mxu0 0.0
    %1749 = vmatprep.subr.mxu0 0.0
    %1750 = vmatpush1.msra.mxu0 0.0
    %1751 = vmatprep.subr.mxu0 0.0
    %1752 = vmatpush1.msra.mxu0 0.0
    %1753 = vmatprep.subr.mxu0 0.0
    %1754 = vmatpush1.msra.mxu0 0.0
    %1755 = vmatprep.subr.mxu0 0.0
    %1756 = vmatpush1.msra.mxu0 0.0
    %1757 = vmatprep.subr.mxu0 0.0
    %1758 = vmatpush1.msra.mxu0 0.0
    %1759 = vmatprep.subr.mxu0 0.0
    %1760 = vmatpush1.msra.mxu0 0.0
    %1761 = vmatprep.subr.mxu0 0.0
    %1762 = vmatpush1.msra.mxu0 0.0
    %1763 = vmatprep.subr.mxu0 0.0
    %1764 = vmatpush1.msra.mxu0 0.0
    %1765 = vmatprep.subr.mxu0 0.0
    %1766 = vmatpush1.msra.mxu0 0.0
    %1767 = vmatprep.subr.mxu0 0.0
    %1768 = vmatpush1.msra.mxu0 0.0
    %1769 = vmatprep.subr.mxu0 0.0
    %1770 = vmatpush1.msra.mxu0 0.0
    %1771 = vmatprep.subr.mxu0 0.0
    %1772 = vmatpush1.msra.mxu0 0.0
    %1773 = vmatprep.subr.mxu0 0.0
    %1774 = vmatpush1.msra.mxu0 0.0
    %1775 = vmatprep.subr.mxu0 0.0
    %1776 = vmatpush1.msra.mxu0 0.0
    %1777 = vmatprep.subr.mxu0 0.0
    %1778 = vmatpush1.msra.mxu0 0.0
    %1779 = vmatprep.subr.mxu0 0.0
    %1780 = vmatpush1.msra.mxu0 0.0
    %1781 = vmatprep.mubr.f32.mxu0 0.0
    %1782 = vmatmul.mubr.f32.gmra.mrb[0].mxu0 %v1710
    %v1783 = vpop.f32.mrb[0].mxu0
    %v1784 = vadd.f32 %v1703, %v1783
    %v1785 = vpop.f32.mrb[0].mxu0
    %1786 = vmatprep.mubr.f32.mxu0 0.0
    %1787 = vmatmul.mubr.f32.gmra.mrb[0].mxu0 %v1712
    %v1788 = vpop.f32.mrb[0].mxu0
    %v1789 = vadd.f32 %v1703, %v1788
    %v1790 = vpop.f32.mrb[0].mxu0
    %1791 = vdwg.mxu0
    %vm1792 = vcmask 31744
    %v1793 = vsel %vm1792, %v1784, -inf
    %1794 = vmax.xlane.f32.xlu0 %v1793
    %v1795 = vpop.xlane.xlu0 %1794
    %v1796 = vsel %vm1792, %v1789, -inf
    %1797 = vmax.xlane.f32.xlu0 %v1796
    %v1798 = vpop.xlane.xlu0 %1797
    %v1799 = vsub.f32 %v1784, %v1795
    %v1800 = vsub.f32 %v1789, %v1798
    %v1801 = vmul.f32 %v1799, 1.442695
    %v1802 = vpow.pop %v1801
    %v1803 = vmul.f32 %v1800, 1.442695
    %v1804 = vpow.pop %v1803
    %v1805 = vsel %vm1792, %v1802, 0.0
    %1806 = vadd.xlane.f32.xlu0 %v1805
    %v1807 = vpop.xlane.xlu0 %1806
    %v1808 = vsel %vm1792, %v1804, 0.0
    %1809 = vadd.xlane.f32.xlu0 %v1808
    %v1810 = vpop.xlane.xlu0 %1809
    %v1811 = vrcp.pop %v1807
    %v1812 = vmul.f32 %v1802, %v1811
    %v1813 = vrcp.pop %v1810
    %v1814 = vmul.f32 %v1804, %v1813
    %1815 = vset.pattern.permute.xlu0 0
    %1816 = vperm.xlu0 %1815, %v422
    %v1817 = vpop.permute.xlu0 %1816
    %vm1818 = vcmp.eq.s32.totalorder %v435, %v1817
    %v1819 = vsel %vm1818, 1.0, 0.0
    %v1821 = vsel %vm43, %v1819, 0
    %1823 = vmatprep.subr.mxu0 0.0
    %1824 = vmatpush1.msra.mxu0 %v1812
    %1825 = vmatprep.subr.mxu0 0.0
    %1826 = vmatpush1.msra.mxu0 %v1814
    %1827 = vmatprep.subr.mxu0 0.0
    %1828 = vmatpush1.msra.mxu0 0.0
    %1829 = vmatprep.subr.mxu0 0.0
    %1830 = vmatpush1.msra.mxu0 0.0
    %1831 = vmatprep.subr.mxu0 0.0
    %1832 = vmatpush1.msra.mxu0 0.0
    %1833 = vmatprep.subr.mxu0 0.0
    %1834 = vmatpush1.msra.mxu0 0.0
    %1835 = vmatprep.subr.mxu0 0.0
    %1836 = vmatpush1.msra.mxu0 0.0
    %1837 = vmatprep.subr.mxu0 0.0
    %1838 = vmatpush1.msra.mxu0 0.0
    %1839 = vmatprep.subr.mxu0 0.0
    %1840 = vmatpush1.msra.mxu0 0.0
    %1841 = vmatprep.subr.mxu0 0.0
    %1842 = vmatpush1.msra.mxu0 0.0
    %1843 = vmatprep.subr.mxu0 0.0
    %1844 = vmatpush1.msra.mxu0 0.0
    %1845 = vmatprep.subr.mxu0 0.0
    %1846 = vmatpush1.msra.mxu0 0.0
    %1847 = vmatprep.subr.mxu0 0.0
    %1848 = vmatpush1.msra.mxu0 0.0
    %1849 = vmatprep.subr.mxu0 0.0
    %1850 = vmatpush1.msra.mxu0 0.0
    %1851 = vmatprep.subr.mxu0 0.0
    %1852 = vmatpush1.msra.mxu0 0.0
    %1853 = vmatprep.subr.mxu0 0.0
    %1854 = vmatpush1.msra.mxu0 0.0
    %1855 = vmatprep.subr.mxu0 0.0
    %1856 = vmatpush1.msra.mxu0 0.0
    %1857 = vmatprep.subr.mxu0 0.0
    %1858 = vmatpush1.msra.mxu0 0.0
    %1859 = vmatprep.subr.mxu0 0.0
    %1860 = vmatpush1.msra.mxu0 0.0
    %1861 = vmatprep.subr.mxu0 0.0
    %1862 = vmatpush1.msra.mxu0 0.0
    %1863 = vmatprep.subr.mxu0 0.0
    %1864 = vmatpush1.msra.mxu0 0.0
    %1865 = vmatprep.subr.mxu0 0.0
    %1866 = vmatpush1.msra.mxu0 0.0
    %1867 = vmatprep.subr.mxu0 0.0
    %1868 = vmatpush1.msra.mxu0 0.0
    %1869 = vmatprep.subr.mxu0 0.0
    %1870 = vmatpush1.msra.mxu0 0.0
    %1871 = vmatprep.subr.mxu0 0.0
    %1872 = vmatpush1.msra.mxu0 0.0
    %1873 = vmatprep.subr.mxu0 0.0
    %1874 = vmatpush1.msra.mxu0 0.0
    %1875 = vmatprep.subr.mxu0 0.0
    %1876 = vmatpush1.msra.mxu0 0.0
    %1877 = vmatprep.subr.mxu0 0.0
    %1878 = vmatpush1.msra.mxu0 0.0
    %1879 = vmatprep.subr.mxu0 0.0
    %1880 = vmatpush1.msra.mxu0 0.0
    %1881 = vmatprep.subr.mxu0 0.0
    %1882 = vmatpush1.msra.mxu0 0.0
    %1883 = vmatprep.subr.mxu0 0.0
    %1884 = vmatpush1.msra.mxu0 0.0
    %1885 = vmatprep.subr.mxu0 0.0
    %1886 = vmatpush1.msra.mxu0 0.0
    %1887 = vmatprep.mubr.f32.mxu0 0.0
    %1888 = vmatmul.mubr.f32.gmra.mrb[0].mxu0 %v1821
    %v1889 = vpop.f32.mrb[0].mxu0
    %v1890 = vadd.f32 0.0, %v1889
    %v1891 = vpop.f32.mrb[0].mxu0
    %1892 = vdwg.mxu0
    %vm1893 = vcmask 29696
    %1894 = vst.msk [vmem:[%s4] sm:$0x3f] %vm1893, %v1890
    // Predicated region
    $region22: #{tpu_custom_call.1} parent=1 // pred_check
      _
    $region23: #{tpu_custom_call.1} parent=1 // pred_check_branch
      %1896 = sbr.rel (0) target = $region25
    $region24: #{tpu_custom_call.1} parent=1 // pred_region
      _
    $region25: #{tpu_custom_call.1} parent=1 // pred_fallthru
      _
    // Predicated region
    $region26: #{tpu_custom_call.1} parent=1 // pred_check
      _
    $region27: #{tpu_custom_call.1} parent=1 // pred_check_branch
      %1898 = sbr.rel (0) target = $region29
    $region28: #{tpu_custom_call.1} parent=1 // pred_region
      _
    $region29: #{tpu_custom_call.1} parent=1 // pred_fallthru
      _
    %1899 = vsyncpa [#allocation3], 1

</llo_original>
